<compile_context>
chip_gen: v5e
topology: v5e:2x2
jax: 0.10.0
libtpu: 0.0.40
codegen_flags: <defaults>
</compile_context>

<pallas_src>
import functools

import jax
import jax.numpy as jnp
from jax.experimental import pallas as pl
from jax.experimental.pallas import tpu as pltpu


def _round_up(x, m):
    return ((x + m - 1) // m) * m


def _pack_rows(named_arrays, align=8):
    """Row-stack 2-D (rows, C) arrays into one buffer; each segment starts at a
    multiple of `align` rows so in-kernel static slices are sublane-aligned."""
    offs, total = {}, 0
    for name, a in named_arrays:
        total = _round_up(total, align)
        offs[name] = total
        total += a.shape[0]
    total = _round_up(total, align)
    ncols = named_arrays[0][1].shape[1]
    buf = jnp.zeros((total, ncols), jnp.float32)
    for name, a in named_arrays:
        buf = buf.at[offs[name]:offs[name] + a.shape[0], :].set(
            a.astype(jnp.float32))
    return buf, offs


# ----------------------------------------------------------------------------
# Pallas kernel: CNP forward for a tile of TB tasks (all points in VMEM).
# ----------------------------------------------------------------------------
def _cnp_kernel(xc_ref, yc_ref, xt_ref, pm_ref, po_ref, out_ref,
                *, latent_dim, output_dim, offs):
    f32 = jnp.float32
    L, Do = latent_dim, output_dim

    xc = xc_ref[...]          # (TB, Nc, Dx)
    yc = yc_ref[...]          # (TB, Nc, Dy)
    xt = xt_ref[...]          # (TB, Nt, Dx)
    TB, Nc, Dx = xc.shape
    Dy = yc.shape[-1]
    Nt = xt.shape[1]

    def rows(name, n):        # (n, cols) static slice of a packed param buffer
        o = offs[name]
        return pm_ref[o:o + n, :]

    def row(name, j=0):       # (1, cols)
        o = offs[name] + j
        return pm_ref[o:o + 1, :]

    relu = lambda v: jnp.maximum(v, 0.0)

    # ---------------- encoder (pre-pooling MLP over context points) ---------
    # First layer acts on concat([xc, yc], -1); contraction depth is only
    # Dx+Dy (2-3), so do it with VPU broadcast-FMAs instead of the MXU.
    h = xc[:, :, 0:1] * row("e_w1x", 0)
    for j in range(1, Dx):
        h = h + xc[:, :, j:j + 1] * row("e_w1x", j)
    for j in range(Dy):
        h = h + yc[:, :, j:j + 1] * row("e_w1y", j)
    h = relu(h + row("e_b1"))                          # (TB, Nc, L)

    h = h.reshape(TB * Nc, L)                          # flatten tasks for MXU
    h = relu(jnp.dot(h, rows("e_w2", L), preferred_element_type=f32) + row("e_b2"))
    h = relu(jnp.dot(h, rows("e_w3", L), preferred_element_type=f32) + row("e_b3"))
    h = jnp.dot(h, rows("e_w4", L), preferred_element_type=f32) + row("e_b4")

    # mean pooling over each task's context points -> r, (TB, L)
    r = jnp.mean(h.reshape(TB, Nc, L), axis=1)

    # ---------------- decoder (post-pooling MLP over target points) ---------
    # First layer acts on concat([xt, r], -1): xt part as VPU FMAs (K=Dx),
    # r part as one (TB,L)@(L,L) matmul, broadcast over the Nt targets.
    rz = jnp.dot(r, rows("d_w1r", L), preferred_element_type=f32)   # (TB, L)
    z = xt[:, :, 0:1] * row("d_w1x", 0)
    for j in range(1, Dx):
        z = z + xt[:, :, j:j + 1] * row("d_w1x", j)
    z = relu(z + rz[:, None, :] + row("d_b1"))         # (TB, Nt, L)

    z = z.reshape(TB * Nt, L)
    z = relu(jnp.dot(z, rows("d_w2", L), preferred_element_type=f32) + row("d_b2"))

    o3 = offs["d_w3"]
    w3 = po_ref[o3:o3 + L, :]                          # (L, 2*Do)
    b3 = po_ref[offs["d_b3"]:offs["d_b3"] + 1, :]      # (1, 2*Do)
    z = jnp.dot(z, w3, preferred_element_type=f32) + b3    # (TB*Nt, 2*Do)

    # Fused output: apply softplus to the sigma half via a lane-index mask and
    # write a single lane-contiguous block; wrapper slices mean/sigma.
    cols = jax.lax.broadcasted_iota(jnp.int32, z.shape, 1)
    z = jnp.where(cols >= Do, jax.nn.softplus(z), z)

    out_ref[...] = z.reshape(TB, Nt, 2 * Do).astype(out_ref.dtype)


# ----------------------------------------------------------------------------
# Wrapper
# ----------------------------------------------------------------------------
def cnp_forward(params, x_context, y_context, x_target, *, tile_batch=8):
    B, Nc, Dx = x_context.shape
    _, _, Dy = y_context.shape
    _, Nt, _ = x_target.shape
    L = params["e_b1"].shape[-1]
    Do = params["d_b3"].shape[-1] // 2

    # Pack the 16 parameter tensors into two buffers (one with last-dim L, one
    # with last-dim 2*Do), row-stacked and 8-row aligned.
    pm, offs_m = _pack_rows([
        ("e_w1x", params["e_w1x"]), ("e_w1y", params["e_w1y"]), ("e_b1", params["e_b1"]),
        ("e_w2", params["e_w2"]), ("e_b2", params["e_b2"]),
        ("e_w3", params["e_w3"]), ("e_b3", params["e_b3"]),
        ("e_w4", params["e_w4"]), ("e_b4", params["e_b4"]),
        ("d_w1x", params["d_w1x"]), ("d_w1r", params["d_w1r"]), ("d_b1", params["d_b1"]),
        ("d_w2", params["d_w2"]), ("d_b2", params["d_b2"]),
    ])
    po, offs_o = _pack_rows([("d_w3", params["d_w3"]), ("d_b3", params["d_b3"])])
    offs = dict(offs_m, **offs_o)

    # Batch tile: many independent tasks per grid step. Pad B up to a multiple
    # of TB (padded tasks compute garbage that is sliced away; tasks never mix,
    # so the per-task mean pooling stays correct).
    TB = max(1, min(tile_batch, B))
    Bp = _round_up(B, TB)
    if Bp != B:
        pad = [(0, Bp - B), (0, 0), (0, 0)]
        x_context = jnp.pad(x_context, pad)
        y_context = jnp.pad(y_context, pad)
        x_target = jnp.pad(x_target, pad)

    kernel = functools.partial(_cnp_kernel, latent_dim=L, output_dim=Do, offs=offs)

    flops_task = 2 * (Nc * (Dx + Dy) * L + 3 * Nc * L * L
                      + Nt * Dx * L + L * L + Nt * L * L + Nt * L * 2 * Do)
    cost = pl.CostEstimate(
        flops=int(Bp * flops_task),
        transcendentals=int(Bp * Nt * 2 * Do),
        bytes_accessed=int(4 * (Bp * Nc * (Dx + Dy) + Bp * Nt * Dx
                                + Bp * Nt * 2 * Do + pm.size + po.size)),
    )

    out = pl.pallas_call(
        kernel,
        out_shape=jax.ShapeDtypeStruct((Bp, Nt, 2 * Do), jnp.float32),
        grid_spec=pltpu.PrefetchScalarGridSpec(
            num_scalar_prefetch=0,
            grid=(Bp // TB,),
            in_specs=[
                pl.BlockSpec((TB, Nc, Dx), lambda b: (b, 0, 0)),
                pl.BlockSpec((TB, Nc, Dy), lambda b: (b, 0, 0)),
                pl.BlockSpec((TB, Nt, Dx), lambda b: (b, 0, 0)),
                pl.BlockSpec(pm.shape, lambda b: (0, 0)),   # constant-index: fetched once
                pl.BlockSpec(po.shape, lambda b: (0, 0)),
            ],
            out_specs=pl.BlockSpec((TB, Nt, 2 * Do), lambda b: (b, 0, 0)),
        ),
        compiler_params=pltpu.CompilerParams(
            # batch tiles are independent (output index_map injective in b):
            # lets Mosaic shard the grid across both TensorCores on v7x.
            dimension_semantics=("parallel",),
        ),
        cost_estimate=cost,
    )(x_context, y_context, x_target, pm, po)

    out = out[:B]
    mean = out[..., :Do]
    sigma = out[..., Do:]          # softplus already applied in-kernel
    return mean, sigma


# ----------------------------------------------------------------------------
# Deterministic parameter init (mirrors nn.Linear shapes, stored transposed as
# (in, out) so the kernel does x @ W + b).
# ----------------------------------------------------------------------------
def init_params(key, input_dim, latent_dim, output_dim):
    def lin(key, fan_in, fan_out):
        kw, kb = jax.random.split(key)
        scale = 1.0 / jnp.sqrt(fan_in)
        w = jax.random.uniform(kw, (fan_in, fan_out), jnp.float32, -scale, scale)
        b = jax.random.uniform(kb, (1, fan_out), jnp.float32, -scale, scale)
        return w, b

    keys = jax.random.split(key, 7)
    L, Dx = latent_dim, input_dim

    # encoder: Linear(Dx+Dy, L), Linear(L, L), Linear(L, L), Linear(L, L)
    w1, b1 = lin(keys[0], Dx + output_dim, L)
    w2, b2 = lin(keys[1], L, L)
    w3, b3 = lin(keys[2], L, L)
    w4, b4 = lin(keys[3], L, L)
    # decoder: Linear(Dx+L, L), Linear(L, L), Linear(L, 2*Do)
    dw1, db1 = lin(keys[4], Dx + L, L)
    dw2, db2 = lin(keys[5], L, L)
    dw3, db3 = lin(keys[6], L, 2 * output_dim)

    return {
        "e_w1x": w1[:Dx], "e_w1y": w1[Dx:], "e_b1": b1,
        "e_w2": w2, "e_b2": b2,
        "e_w3": w3, "e_b3": b3,
        "e_w4": w4, "e_b4": b4,
        "d_w1x": dw1[:Dx], "d_w1r": dw1[Dx:], "d_b1": db1,
        "d_w2": dw2, "d_b2": db2,
        "d_w3": dw3, "d_b3": db3,
    }


# ----------------------------------------------------------------------------
# Pure-JAX reference (mirrors the PyTorch module exactly) for verification.
# ----------------------------------------------------------------------------
def cnp_reference(params, xc, yc, xt):
    relu = lambda v: jnp.maximum(v, 0.0)
    ew1 = jnp.concatenate([params["e_w1x"], params["e_w1y"]], axis=0)
    h = jnp.concatenate([xc, yc], axis=-1)
    h = relu(h @ ew1 + params["e_b1"])
    h = relu(h @ params["e_w2"] + params["e_b2"])
    h = relu(h @ params["e_w3"] + params["e_b3"])
    h = h @ params["e_w4"] + params["e_b4"]
    r = jnp.mean(h, axis=1, keepdims=True)                 # (B, 1, L)
    r = jnp.repeat(r, xt.shape[1], axis=1)                 # r.repeat(1, Nt, 1)

    dw1 = jnp.concatenate([params["d_w1x"], params["d_w1r"]], axis=0)
    z = jnp.concatenate([xt, r], axis=-1)
    z = relu(z @ dw1 + params["d_b1"])
    z = relu(z @ params["d_w2"] + params["d_b2"])
    z = z @ params["d_w3"] + params["d_b3"]
    Do = params["d_b3"].shape[-1] // 2
    return z[..., :Do], jax.nn.softplus(z[..., Do:])


if __name__ == "__main__":
    # small, deterministic example shapes (several tasks so TB batching kicks in)
    batch, num_context, num_target = 16, 8, 16
    input_dim, latent_dim, output_dim = 2, 32, 1

    key = jax.random.PRNGKey(0)
    kp, kxc, kyc, kxt = jax.random.split(key, 4)

    params = init_params(kp, input_dim, latent_dim, output_dim)
    x_context = jax.random.normal(kxc, (batch, num_context, input_dim), jnp.float32)
    y_context = jax.random.normal(kyc, (batch, num_context, output_dim), jnp.float32)
    x_target = jax.random.normal(kxt, (batch, num_target, input_dim), jnp.float32)

    mean, sigma = cnp_forward(params, x_context, y_context, x_target, tile_batch=8)
    jax.block_until_ready((mean, sigma))

    ref_mean, ref_sigma = cnp_reference(params, x_context, y_context, x_target)
    assert mean.shape == (batch, num_target, output_dim)
    assert sigma.shape == (batch, num_target, output_dim)
    assert jnp.allclose(mean, ref_mean, atol=1e-5, rtol=1e-5)
    assert jnp.allclose(sigma, ref_sigma, atol=1e-5, rtol=1e-5)

    print("KERNEL_OK")
</pallas_src>

<mosaic_0001>
module attributes {stable_mosaic.version = 11 : i64} {
  func.func @_cnp_kernel(%arg0: i32, %arg1: memref<8x8x2xf32, #tpu.memory_space<vmem>>, %arg2: memref<8x8x1xf32, #tpu.memory_space<vmem>>, %arg3: memref<8x16x2xf32, #tpu.memory_space<vmem>>, %arg4: memref<232x32xf32, #tpu.memory_space<vmem>>, %arg5: memref<40x2xf32, #tpu.memory_space<vmem>>, %arg6: memref<8x16x2xf32, #tpu.memory_space<vmem>>) attributes {dimension_semantics = [#tpu.dimension_semantics<parallel>], iteration_bounds = array<i64: 2>, scalar_prefetch = 0 : i64, scratch_operands = 0 : i64, tpu.core_type = #tpu.core_type<tc>, window_params = [{transform_indices = @transform_0, window_bounds = array<i64: 8, 8, 2>}, {transform_indices = @transform_1, window_bounds = array<i64: 8, 8, 1>}, {transform_indices = @transform_2, window_bounds = array<i64: 8, 16, 2>}, {pipeline_mode = #tpu.pipeline_mode<synchronous>, transform_indices = @transform_3, window_bounds = array<i64: 232, 32>}, {pipeline_mode = #tpu.pipeline_mode<synchronous>, transform_indices = @transform_4, window_bounds = array<i64: 40, 2>}, {transform_indices = @transform_5, window_bounds = array<i64: 8, 16, 2>}]} {
    %c0 = arith.constant 0 : index
    %c0_0 = arith.constant 0 : index
    %c0_1 = arith.constant 0 : index
    %0 = vector.load %arg1[%c0, %c0_0, %c0_1] : memref<8x8x2xf32, #tpu.memory_space<vmem>>, vector<8x8x2xf32>
    %c0_2 = arith.constant 0 : index
    %c0_3 = arith.constant 0 : index
    %c0_4 = arith.constant 0 : index
    %1 = vector.load %arg2[%c0_2, %c0_3, %c0_4] : memref<8x8x1xf32, #tpu.memory_space<vmem>>, vector<8x8x1xf32>
    %c0_5 = arith.constant 0 : index
    %c0_6 = arith.constant 0 : index
    %c0_7 = arith.constant 0 : index
    %2 = vector.load %arg3[%c0_5, %c0_6, %c0_7] : memref<8x16x2xf32, #tpu.memory_space<vmem>>, vector<8x16x2xf32>
    %3 = vector.extract_strided_slice %0 {offsets = [0, 0, 0], sizes = [8, 8, 1], strides = [1, 1, 1]} : vector<8x8x2xf32> to vector<8x8x1xf32>
    %c0_8 = arith.constant 0 : index
    %c0_9 = arith.constant 0 : index
    %4 = vector.load %arg4[%c0_8, %c0_9] : memref<232x32xf32, #tpu.memory_space<vmem>>, vector<1x32xf32>
    %5 = vector.shape_cast %4 : vector<1x32xf32> to vector<1x1x32xf32>
    %6 = vector.broadcast %3 : vector<8x8x1xf32> to vector<8x8x32xf32>
    %7 = vector.broadcast %5 : vector<1x1x32xf32> to vector<8x8x32xf32>
    %8 = arith.mulf %6, %7 : vector<8x8x32xf32>
    %9 = vector.extract_strided_slice %0 {offsets = [0, 0, 1], sizes = [8, 8, 1], strides = [1, 1, 1]} : vector<8x8x2xf32> to vector<8x8x1xf32>
    %c1 = arith.constant 1 : index
    %c0_10 = arith.constant 0 : index
    %10 = vector.load %arg4[%c1, %c0_10] : memref<232x32xf32, #tpu.memory_space<vmem>>, vector<1x32xf32>
    %11 = vector.shape_cast %10 : vector<1x32xf32> to vector<1x1x32xf32>
    %12 = vector.broadcast %9 : vector<8x8x1xf32> to vector<8x8x32xf32>
    %13 = vector.broadcast %11 : vector<1x1x32xf32> to vector<8x8x32xf32>
    %14 = arith.mulf %12, %13 : vector<8x8x32xf32>
    %15 = arith.addf %8, %14 : vector<8x8x32xf32>
    %c8 = arith.constant 8 : index
    %c0_11 = arith.constant 0 : index
    %16 = vector.load %arg4[%c8, %c0_11] : memref<232x32xf32, #tpu.memory_space<vmem>>, vector<1x32xf32>
    %17 = vector.shape_cast %16 : vector<1x32xf32> to vector<1x1x32xf32>
    %18 = vector.broadcast %1 : vector<8x8x1xf32> to vector<8x8x32xf32>
    %19 = vector.broadcast %17 : vector<1x1x32xf32> to vector<8x8x32xf32>
    %20 = arith.mulf %18, %19 : vector<8x8x32xf32>
    %21 = arith.addf %15, %20 : vector<8x8x32xf32>
    %c16 = arith.constant 16 : index
    %c0_12 = arith.constant 0 : index
    %22 = vector.load %arg4[%c16, %c0_12] : memref<232x32xf32, #tpu.memory_space<vmem>>, vector<1x32xf32>
    %23 = vector.shape_cast %22 : vector<1x32xf32> to vector<1x1x32xf32>
    %24 = vector.broadcast %23 : vector<1x1x32xf32> to vector<8x8x32xf32>
    %25 = arith.addf %21, %24 : vector<8x8x32xf32>
    %cst = arith.constant 0.000000e+00 : f32
    %26 = vector.broadcast %cst : f32 to vector<8x8x32xf32>
    %27 = arith.maximumf %25, %26 : vector<8x8x32xf32>
    %28 = vector.shape_cast %27 : vector<8x8x32xf32> to vector<64x32xf32>
    %c24 = arith.constant 24 : index
    %c0_13 = arith.constant 0 : index
    %29 = vector.load %arg4[%c24, %c0_13] : memref<232x32xf32, #tpu.memory_space<vmem>>, vector<32x32xf32>
    %cst_14 = arith.constant dense<0.000000e+00> : vector<64x32xf32>
    %30 = tpu.matmul %28, %29, %cst_14 {dimension_numbers = #tpu.dot_dimension_numbers<[1], [0], [0], [1], [0, 0, 1, 1], [], []>} : vector<64x32xf32>, vector<32x32xf32>, vector<64x32xf32> -> vector<64x32xf32>
    %c56 = arith.constant 56 : index
    %c0_15 = arith.constant 0 : index
    %31 = vector.load %arg4[%c56, %c0_15] : memref<232x32xf32, #tpu.memory_space<vmem>>, vector<1x32xf32>
    %32 = vector.broadcast %31 : vector<1x32xf32> to vector<64x32xf32>
    %33 = arith.addf %30, %32 : vector<64x32xf32>
    %cst_16 = arith.constant 0.000000e+00 : f32
    %34 = vector.broadcast %cst_16 : f32 to vector<64x32xf32>
    %35 = arith.maximumf %33, %34 : vector<64x32xf32>
    %c64 = arith.constant 64 : index
    %c0_17 = arith.constant 0 : index
    %36 = vector.load %arg4[%c64, %c0_17] : memref<232x32xf32, #tpu.memory_space<vmem>>, vector<32x32xf32>
    %cst_18 = arith.constant dense<0.000000e+00> : vector<64x32xf32>
    %37 = tpu.matmul %35, %36, %cst_18 {dimension_numbers = #tpu.dot_dimension_numbers<[1], [0], [0], [1], [0, 0, 1, 1], [], []>} : vector<64x32xf32>, vector<32x32xf32>, vector<64x32xf32> -> vector<64x32xf32>
    %c96 = arith.constant 96 : index
    %c0_19 = arith.constant 0 : index
    %38 = vector.load %arg4[%c96, %c0_19] : memref<232x32xf32, #tpu.memory_space<vmem>>, vector<1x32xf32>
    %39 = vector.broadcast %38 : vector<1x32xf32> to vector<64x32xf32>
    %40 = arith.addf %37, %39 : vector<64x32xf32>
    %cst_20 = arith.constant 0.000000e+00 : f32
    %41 = vector.broadcast %cst_20 : f32 to vector<64x32xf32>
    %42 = arith.maximumf %40, %41 : vector<64x32xf32>
    %c104 = arith.constant 104 : index
    %c0_21 = arith.constant 0 : index
    %43 = vector.load %arg4[%c104, %c0_21] : memref<232x32xf32, #tpu.memory_space<vmem>>, vector<32x32xf32>
    %cst_22 = arith.constant dense<0.000000e+00> : vector<64x32xf32>
    %44 = tpu.matmul %42, %43, %cst_22 {dimension_numbers = #tpu.dot_dimension_numbers<[1], [0], [0], [1], [0, 0, 1, 1], [], []>} : vector<64x32xf32>, vector<32x32xf32>, vector<64x32xf32> -> vector<64x32xf32>
    %c136 = arith.constant 136 : index
    %c0_23 = arith.constant 0 : index
    %45 = vector.load %arg4[%c136, %c0_23] : memref<232x32xf32, #tpu.memory_space<vmem>>, vector<1x32xf32>
    %46 = vector.broadcast %45 : vector<1x32xf32> to vector<64x32xf32>
    %47 = arith.addf %44, %46 : vector<64x32xf32>
    %48 = vector.shape_cast %47 : vector<64x32xf32> to vector<8x8x32xf32>
    %cst_24 = arith.constant dense<0.000000e+00> : vector<8x32xf32>
    %49 = vector.multi_reduction <add>, %48, %cst_24 [1] : vector<8x8x32xf32> to vector<8x32xf32>
    %cst_25 = arith.constant 8.000000e+00 : f32
    %50 = vector.broadcast %cst_25 : f32 to vector<8x32xf32>
    %51 = arith.divf %49, %50 : vector<8x32xf32>
    %c152 = arith.constant 152 : index
    %c0_26 = arith.constant 0 : index
    %52 = vector.load %arg4[%c152, %c0_26] : memref<232x32xf32, #tpu.memory_space<vmem>>, vector<32x32xf32>
    %cst_27 = arith.constant dense<0.000000e+00> : vector<8x32xf32>
    %53 = tpu.matmul %51, %52, %cst_27 {dimension_numbers = #tpu.dot_dimension_numbers<[1], [0], [0], [1], [0, 0, 1, 1], [], []>} : vector<8x32xf32>, vector<32x32xf32>, vector<8x32xf32> -> vector<8x32xf32>
    %54 = vector.extract_strided_slice %2 {offsets = [0, 0, 0], sizes = [8, 16, 1], strides = [1, 1, 1]} : vector<8x16x2xf32> to vector<8x16x1xf32>
    %c144 = arith.constant 144 : index
    %c0_28 = arith.constant 0 : index
    %55 = vector.load %arg4[%c144, %c0_28] : memref<232x32xf32, #tpu.memory_space<vmem>>, vector<1x32xf32>
    %56 = vector.shape_cast %55 : vector<1x32xf32> to vector<1x1x32xf32>
    %57 = vector.broadcast %54 : vector<8x16x1xf32> to vector<8x16x32xf32>
    %58 = vector.broadcast %56 : vector<1x1x32xf32> to vector<8x16x32xf32>
    %59 = arith.mulf %57, %58 : vector<8x16x32xf32>
    %60 = vector.extract_strided_slice %2 {offsets = [0, 0, 1], sizes = [8, 16, 1], strides = [1, 1, 1]} : vector<8x16x2xf32> to vector<8x16x1xf32>
    %c145 = arith.constant 145 : index
    %c0_29 = arith.constant 0 : index
    %61 = vector.load %arg4[%c145, %c0_29] : memref<232x32xf32, #tpu.memory_space<vmem>>, vector<1x32xf32>
    %62 = vector.shape_cast %61 : vector<1x32xf32> to vector<1x1x32xf32>
    %63 = vector.broadcast %60 : vector<8x16x1xf32> to vector<8x16x32xf32>
    %64 = vector.broadcast %62 : vector<1x1x32xf32> to vector<8x16x32xf32>
    %65 = arith.mulf %63, %64 : vector<8x16x32xf32>
    %66 = arith.addf %59, %65 : vector<8x16x32xf32>
    %67 = vector.shape_cast %53 : vector<8x32xf32> to vector<8x1x32xf32>
    %68 = vector.broadcast %67 : vector<8x1x32xf32> to vector<8x16x32xf32>
    %69 = arith.addf %66, %68 : vector<8x16x32xf32>
    %c184 = arith.constant 184 : index
    %c0_30 = arith.constant 0 : index
    %70 = vector.load %arg4[%c184, %c0_30] : memref<232x32xf32, #tpu.memory_space<vmem>>, vector<1x32xf32>
    %71 = vector.shape_cast %70 : vector<1x32xf32> to vector<1x1x32xf32>
    %72 = vector.broadcast %71 : vector<1x1x32xf32> to vector<8x16x32xf32>
    %73 = arith.addf %69, %72 : vector<8x16x32xf32>
    %cst_31 = arith.constant 0.000000e+00 : f32
    %74 = vector.broadcast %cst_31 : f32 to vector<8x16x32xf32>
    %75 = arith.maximumf %73, %74 : vector<8x16x32xf32>
    %76 = vector.shape_cast %75 : vector<8x16x32xf32> to vector<128x32xf32>
    %c192 = arith.constant 192 : index
    %c0_32 = arith.constant 0 : index
    %77 = vector.load %arg4[%c192, %c0_32] : memref<232x32xf32, #tpu.memory_space<vmem>>, vector<32x32xf32>
    %cst_33 = arith.constant dense<0.000000e+00> : vector<128x32xf32>
    %78 = tpu.matmul %76, %77, %cst_33 {dimension_numbers = #tpu.dot_dimension_numbers<[1], [0], [0], [1], [0, 0, 1, 1], [], []>} : vector<128x32xf32>, vector<32x32xf32>, vector<128x32xf32> -> vector<128x32xf32>
    %c224 = arith.constant 224 : index
    %c0_34 = arith.constant 0 : index
    %79 = vector.load %arg4[%c224, %c0_34] : memref<232x32xf32, #tpu.memory_space<vmem>>, vector<1x32xf32>
    %80 = vector.broadcast %79 : vector<1x32xf32> to vector<128x32xf32>
    %81 = arith.addf %78, %80 : vector<128x32xf32>
    %cst_35 = arith.constant 0.000000e+00 : f32
    %82 = vector.broadcast %cst_35 : f32 to vector<128x32xf32>
    %83 = arith.maximumf %81, %82 : vector<128x32xf32>
    %c0_36 = arith.constant 0 : index
    %c0_37 = arith.constant 0 : index
    %84 = vector.load %arg5[%c0_36, %c0_37] : memref<40x2xf32, #tpu.memory_space<vmem>>, vector<32x2xf32>
    %c32 = arith.constant 32 : index
    %c0_38 = arith.constant 0 : index
    %85 = vector.load %arg5[%c32, %c0_38] : memref<40x2xf32, #tpu.memory_space<vmem>>, vector<1x2xf32>
    %cst_39 = arith.constant dense<0.000000e+00> : vector<128x2xf32>
    %86 = tpu.matmul %83, %84, %cst_39 {dimension_numbers = #tpu.dot_dimension_numbers<[1], [0], [0], [1], [0, 0, 1, 1], [], []>} : vector<128x32xf32>, vector<32x2xf32>, vector<128x2xf32> -> vector<128x2xf32>
    %87 = vector.broadcast %85 : vector<1x2xf32> to vector<128x2xf32>
    %88 = arith.addf %86, %87 : vector<128x2xf32>
    %89 = tpu.iota {dimensions = array<i32: 1>} : vector<128x2xi32>
    %c1_i32 = arith.constant 1 : i32
    %90 = vector.broadcast %c1_i32 : i32 to vector<128x2xi32>
    %91 = arith.cmpi sge, %89, %90 : vector<128x2xi32>
    %cst_40 = arith.constant 0.000000e+00 : f32
    %92 = vector.broadcast %cst_40 : f32 to vector<128x2xf32>
    %93 = arith.maximumf %88, %92 : vector<128x2xf32>
    %94 = vector.broadcast %cst_40 : f32 to vector<128x2xf32>
    %95 = arith.subf %88, %94 : vector<128x2xf32>
    %96 = arith.cmpf one, %95, %95 : vector<128x2xf32>
    %97 = vector.broadcast %cst_40 : f32 to vector<128x2xf32>
    %98 = arith.addf %88, %97 : vector<128x2xf32>
    %99 = math.absf %95 : vector<128x2xf32>
    %cst_41 = arith.constant 0.000000e+00 : f32
    %100 = vector.broadcast %cst_41 : f32 to vector<128x2xf32>
    %101 = arith.subf %100, %99 : vector<128x2xf32>
    %102 = math.exp %101 : vector<128x2xf32>
    %103 = math.log1p %102 : vector<128x2xf32>
    %104 = arith.addf %93, %103 : vector<128x2xf32>
    %105 = arith.select %96, %98, %104 : vector<128x2xi1>, vector<128x2xf32>
    %106 = arith.select %91, %105, %88 : vector<128x2xi1>, vector<128x2xf32>
    %107 = vector.shape_cast %106 : vector<128x2xf32> to vector<8x16x2xf32>
    %c0_42 = arith.constant 0 : index
    %c0_43 = arith.constant 0 : index
    %c0_44 = arith.constant 0 : index
    %108 = vector.load %arg6[%c0_42, %c0_43, %c0_44] : memref<8x16x2xf32, #tpu.memory_space<vmem>>, vector<8x16x2xf32>
    tpu.vector_store %arg6[%c0_42, %c0_43, %c0_44], %107 {strides = array<i32>} : memref<8x16x2xf32, #tpu.memory_space<vmem>>, vector<8x16x2xf32>,
    return
  }
  func.func @transform_0(%arg0: i32) -> (i32, i32, i32) {
    %c0_i32 = arith.constant 0 : i32
    %c0_i32_0 = arith.constant 0 : i32
    %c0_i32_1 = arith.constant 0 : i32
    return %arg0, %c0_i32, %c0_i32_0 : i32, i32, i32
  }
  func.func @transform_1(%arg0: i32) -> (i32, i32, i32) {
    %c0_i32 = arith.constant 0 : i32
    %c0_i32_0 = arith.constant 0 : i32
    %c0_i32_1 = arith.constant 0 : i32
    return %arg0, %c0_i32, %c0_i32_0 : i32, i32, i32
  }
  func.func @transform_2(%arg0: i32) -> (i32, i32, i32) {
    %c0_i32 = arith.constant 0 : i32
    %c0_i32_0 = arith.constant 0 : i32
    %c0_i32_1 = arith.constant 0 : i32
    return %arg0, %c0_i32, %c0_i32_0 : i32, i32, i32
  }
  func.func @transform_3(%arg0: i32) -> (i32, i32) {
    %c0_i32 = arith.constant 0 : i32
    %c0_i32_0 = arith.constant 0 : i32
    %c0_i32_1 = arith.constant 0 : i32
    return %c0_i32, %c0_i32_0 : i32, i32
  }
  func.func @transform_4(%arg0: i32) -> (i32, i32) {
    %c0_i32 = arith.constant 0 : i32
    %c0_i32_0 = arith.constant 0 : i32
    %c0_i32_1 = arith.constant 0 : i32
    return %c0_i32, %c0_i32_0 : i32, i32
  }
  func.func @transform_5(%arg0: i32) -> (i32, i32, i32) {
    %c0_i32 = arith.constant 0 : i32
    %c0_i32_0 = arith.constant 0 : i32
    %c0_i32_1 = arith.constant 0 : i32
    return %arg0, %c0_i32, %c0_i32_0 : i32, i32, i32
  }
}

</mosaic_0001>

<llo_original>
// kernel: tpu_custom_call.1
$region0: #{tpu_custom_call.1}
  #allocation0 [shape = 'u32[]', space=smem, size = 0x4, offset = 0x4, fixed_abs, tag = 'smem constant byte address 0x4 - core index']
  #allocation1 [shape = 'u32[72,128]{1,0:T(1,128)}', space=vmem, size = 0x9000, scoped, tag = 'internal scratch']
  %s0 = inlined_call_operand.vmem [shape: f32[16,8,2], index: 0, kind: input, shape index: {}]
  %s1 = inlined_call_operand.vmem [shape: f32[16,8,1], index: 1, kind: input, shape index: {}]
  %s2 = inlined_call_operand.vmem [shape: f32[16,16,2], index: 2, kind: input, shape index: {}]
  %s3 = inlined_call_operand.vmem [shape: f32[232,32], index: 3, kind: input, shape index: {}]
  %s4 = inlined_call_operand.vmem [shape: f32[40,2], index: 4, kind: input, shape index: {}]
  %s5 = inlined_call_operand.vmem [shape: f32[16,16,2], index: 5, kind: output, shape index: {}]
  %s6 = sld [smem:[#allocation0]]
  $region53: #{tpu_custom_call.1} parent=0
    _
  %s8 = ssub.s32 1, %s6
  %s9 = scalar_select 0, %s8, %s6
  loop: start=0, step=1, limit=4
  $region2: #{tpu_custom_call.1} parent=0 // loop_pre_header
    _
  $region3: #{tpu_custom_call.1} parent=0 // loop_header
    %s11 = sphi 0, %s15
    %p12 = scmp.ge.s32.totalorder %s11, 4
    %s21 = sphi 0, %s23
    %s24 = sphi 0, %s21
    %s25 = sphi 0, %s24
    %s41 = sphi 0, %s25
    %s47 = sphi 0, %s49
    %s50 = sphi 0, %s47
    %s51 = sphi 0, %s50
    %s67 = sphi 0, %s51
    %s73 = sphi 0, %s75
    %s76 = sphi 0, %s73
    %s77 = sphi 0, %s76
    %s93 = sphi 0, %s77
    %s97 = sphi 0, %s97
    %s99 = sphi 0, %s97
    %s100 = sphi 0, %s99
    %s114 = sphi 0, %s100
    %s118 = sphi 0, %s118
    %s120 = sphi 0, %s118
    %s121 = sphi 0, %s120
    %s135 = sphi 0, %s121
    %s141 = sphi 0, %s143
    %s144 = sphi 0, %s141
    %s145 = sphi 0, %s144
    %s161 = sphi 0, %s145
  $region4: #{tpu_custom_call.1} parent=0 // loop_header_branch
    %14 = sbr.rel (%p12) target = $region8
  $region5: #{tpu_custom_call.1} parent=0 // loop_body
    %s16 = ssub.s32 %s11, 1
    %s17 = ssub.s32 %s11, 2
    %s18 = sadd.s32 %s11, 1
    %s19 = ssub.s32 %s11, %s18
    %p20 = scmp.eq.s32.totalorder %s19, 0
    %s22 = sadd.s32 %s21, 1
    %s23 = scalar_select %p20, %s21, %s22
    %p26 = pneg %p20
    %p27 = scmp.eq.s32.totalorder %s11, 1
    %p28 = por %p26, %p27
    %p29 = scmp.ne.s32.totalorder %s21, %s24
    %p30 = scmp.eq.s32.totalorder %s11, 0
    %p31 = por %p29, %p30
    %p32 = scmp.ne.s32.totalorder %s21, %s24
    %p33 = scmp.eq.s32.totalorder %s16, 1
    %p34 = por %p32, %p33
    %p35 = scmp.ne.s32.totalorder %s24, %s25
    %p36 = scmp.eq.s32.totalorder %s16, 0
    %p37 = por %p35, %p36
    %p38 = scmp.ne.s32.totalorder %s24, %s25
    %p39 = scmp.eq.s32.totalorder %s17, 1
    %p40 = por %p38, %p39
    %p42 = scmp.ne.s32.totalorder %s25, %s41
    %p43 = scmp.eq.s32.totalorder %s17, 0
    %p44 = por %p42, %p43
    %s45 = ssub.s32 %s11, %s18
    %p46 = scmp.eq.s32.totalorder %s45, 0
    %s48 = sadd.s32 %s47, 1
    %s49 = scalar_select %p46, %s47, %s48
    %p52 = pneg %p46
    %p53 = scmp.eq.s32.totalorder %s11, 1
    %p54 = por %p52, %p53
    %p55 = scmp.ne.s32.totalorder %s47, %s50
    %p56 = scmp.eq.s32.totalorder %s11, 0
    %p57 = por %p55, %p56
    %p58 = scmp.ne.s32.totalorder %s47, %s50
    %p59 = scmp.eq.s32.totalorder %s16, 1
    %p60 = por %p58, %p59
    %p61 = scmp.ne.s32.totalorder %s50, %s51
    %p62 = scmp.eq.s32.totalorder %s16, 0
    %p63 = por %p61, %p62
    %p64 = scmp.ne.s32.totalorder %s50, %s51
    %p65 = scmp.eq.s32.totalorder %s17, 1
    %p66 = por %p64, %p65
    %p68 = scmp.ne.s32.totalorder %s51, %s67
    %p69 = scmp.eq.s32.totalorder %s17, 0
    %p70 = por %p68, %p69
    %s71 = ssub.s32 %s11, %s18
    %p72 = scmp.eq.s32.totalorder %s71, 0
    %s74 = sadd.s32 %s73, 1
    %s75 = scalar_select %p72, %s73, %s74
    %p78 = pneg %p72
    %p79 = scmp.eq.s32.totalorder %s11, 1
    %p80 = por %p78, %p79
    %p81 = scmp.ne.s32.totalorder %s73, %s76
    %p82 = scmp.eq.s32.totalorder %s11, 0
    %p83 = por %p81, %p82
    %p84 = scmp.ne.s32.totalorder %s73, %s76
    %p85 = scmp.eq.s32.totalorder %s16, 1
    %p86 = por %p84, %p85
    %p87 = scmp.ne.s32.totalorder %s76, %s77
    %p88 = scmp.eq.s32.totalorder %s16, 0
    %p89 = por %p87, %p88
    %p90 = scmp.ne.s32.totalorder %s76, %s77
    %p91 = scmp.eq.s32.totalorder %s17, 1
    %p92 = por %p90, %p91
    %p94 = scmp.ne.s32.totalorder %s77, %s93
    %p95 = scmp.eq.s32.totalorder %s17, 0
    %p96 = por %p94, %p95
    %s98 = sadd.s32 %s97, 1
    %p101 = scmp.eq.s32.totalorder %s11, 1
    %p102 = scmp.ne.s32.totalorder %s97, %s99
    %p103 = scmp.eq.s32.totalorder %s11, 0
    %p104 = por %p102, %p103
    %p105 = scmp.ne.s32.totalorder %s97, %s99
    %p106 = scmp.eq.s32.totalorder %s16, 1
    %p107 = por %p105, %p106
    %p108 = scmp.ne.s32.totalorder %s99, %s100
    %p109 = scmp.eq.s32.totalorder %s16, 0
    %p110 = por %p108, %p109
    %p111 = scmp.ne.s32.totalorder %s99, %s100
    %p112 = scmp.eq.s32.totalorder %s17, 1
    %p113 = por %p111, %p112
    %p115 = scmp.ne.s32.totalorder %s100, %s114
    %p116 = scmp.eq.s32.totalorder %s17, 0
    %p117 = por %p115, %p116
    %s119 = sadd.s32 %s118, 1
    %p122 = scmp.eq.s32.totalorder %s11, 1
    %p123 = scmp.ne.s32.totalorder %s118, %s120
    %p124 = scmp.eq.s32.totalorder %s11, 0
    %p125 = por %p123, %p124
    %p126 = scmp.ne.s32.totalorder %s118, %s120
    %p127 = scmp.eq.s32.totalorder %s16, 1
    %p128 = por %p126, %p127
    %p129 = scmp.ne.s32.totalorder %s120, %s121
    %p130 = scmp.eq.s32.totalorder %s16, 0
    %p131 = por %p129, %p130
    %p132 = scmp.ne.s32.totalorder %s120, %s121
    %p133 = scmp.eq.s32.totalorder %s17, 1
    %p134 = por %p132, %p133
    %p136 = scmp.ne.s32.totalorder %s121, %s135
    %p137 = scmp.eq.s32.totalorder %s17, 0
    %p138 = por %p136, %p137
    %s139 = ssub.s32 %s11, %s18
    %p140 = scmp.eq.s32.totalorder %s139, 0
    %s142 = sadd.s32 %s141, 1
    %s143 = scalar_select %p140, %s141, %s142
    %p146 = pneg %p140
    %p147 = scmp.eq.s32.totalorder %s11, 1
    %p148 = por %p146, %p147
    %p149 = scmp.ne.s32.totalorder %s141, %s144
    %p150 = scmp.eq.s32.totalorder %s11, 0
    %p151 = por %p149, %p150
    %p152 = scmp.ne.s32.totalorder %s141, %s144
    %p153 = scmp.eq.s32.totalorder %s16, 1
    %p154 = por %p152, %p153
    %p155 = scmp.ne.s32.totalorder %s144, %s145
    %p156 = scmp.eq.s32.totalorder %s16, 0
    %p157 = por %p155, %p156
    %p158 = scmp.ne.s32.totalorder %s144, %s145
    %p159 = scmp.eq.s32.totalorder %s17, 1
    %p160 = por %p158, %p159
    %p162 = scmp.ne.s32.totalorder %s145, %s161
    %p163 = scmp.eq.s32.totalorder %s17, 0
    %p164 = por %p162, %p163
    %p165 = scmp.le.s32.totalorder 1, %s11
    %p166 = scmp.lt.s32.totalorder %s11, 3
    %p167 = pnand %p165, %p166
    %p168 = pneg %p167
    // Predicated region
    $region9: #{tpu_custom_call.1} parent=5 // pred_check
      _
    $region10: #{tpu_custom_call.1} parent=5 // pred_check_branch
      %170 = sbr.rel (%p167) target = $region12
    $region11: #{tpu_custom_call.1} parent=5 // pred_region
      %s171 = ssub.s32 %s11, 1
      // Predicated region
      $region13: #{tpu_custom_call.1} parent=11 // pred_check
        %p172 = pneg %p110
      $region14: #{tpu_custom_call.1} parent=11 // pred_check_branch
        %174 = sbr.rel (%p172) target = $region16
      $region15: #{tpu_custom_call.1} parent=11 // pred_region
        _
      $region16: #{tpu_custom_call.1} parent=11 // pred_fallthru
        _
      // Predicated region
      $region17: #{tpu_custom_call.1} parent=11 // pred_check
        %p175 = pneg %p131
      $region18: #{tpu_custom_call.1} parent=11 // pred_check_branch
        %177 = sbr.rel (%p175) target = $region20
      $region19: #{tpu_custom_call.1} parent=11 // pred_region
        _
      $region20: #{tpu_custom_call.1} parent=11 // pred_fallthru
        _
    $region12: #{tpu_custom_call.1} parent=5 // pred_fallthru
      _
    %p178 = scmp.lt.s32.totalorder %s11, 2
    // Predicated region
    $region21: #{tpu_custom_call.1} parent=5 // pred_check
      %p179 = pneg %p178
    $region22: #{tpu_custom_call.1} parent=5 // pred_check_branch
      %181 = sbr.rel (%p179) target = $region24
    $region23: #{tpu_custom_call.1} parent=5 // pred_region
      // Predicated region
      $region25: #{tpu_custom_call.1} parent=23 // pred_check
        %p182 = pneg %p31
      $region26: #{tpu_custom_call.1} parent=23 // pred_check_branch
        %184 = sbr.rel (%p182) target = $region28
      $region27: #{tpu_custom_call.1} parent=23 // pred_region
        %s185 = smul.u32 8, %s11
        %p186 = scmp.lt.s32.totalorder %s185, 15
        %s187 = scalar_select %p186, %s185, 15
        %s188 = smul.addr %s187, 8
        %s189 = scalar_lea.vmem %s0, %s188
        %s190 = smul.u32 8, %s11
      $region28: #{tpu_custom_call.1} parent=23 // pred_fallthru
        _
      // Predicated region
      $region29: #{tpu_custom_call.1} parent=23 // pred_check
        %p191 = pneg %p57
      $region30: #{tpu_custom_call.1} parent=23 // pred_check_branch
        %193 = sbr.rel (%p191) target = $region32
      $region31: #{tpu_custom_call.1} parent=23 // pred_region
        %s194 = smul.u32 8, %s11
        %p195 = scmp.lt.s32.totalorder %s194, 15
        %s196 = scalar_select %p195, %s194, 15
        %s197 = smul.addr %s196, 8
        %s198 = scalar_lea.vmem %s1, %s197
        %s199 = smul.u32 8, %s11
      $region32: #{tpu_custom_call.1} parent=23 // pred_fallthru
        _
      // Predicated region
      $region33: #{tpu_custom_call.1} parent=23 // pred_check
        %p200 = pneg %p83
      $region34: #{tpu_custom_call.1} parent=23 // pred_check_branch
        %202 = sbr.rel (%p200) target = $region36
      $region35: #{tpu_custom_call.1} parent=23 // pred_region
        %s203 = smul.u32 8, %s11
        %p204 = scmp.lt.s32.totalorder %s203, 15
        %s205 = scalar_select %p204, %s203, 15
        %s206 = smul.addr %s205, 2
        %s207 = smul.addr %s206, 8
        %s208 = scalar_lea.vmem %s2, %s207
        %s209 = smul.u32 8, %s11
      $region36: #{tpu_custom_call.1} parent=23 // pred_fallthru
        _
    $region24: #{tpu_custom_call.1} parent=5 // pred_fallthru
      _
    %p210 = scmp.le.s32.totalorder 1, %s11
    %p211 = scmp.lt.s32.totalorder %s11, 3
    %p212 = pnand %p210, %p211
    %p213 = pneg %p212
    // Predicated region
    $region37: #{tpu_custom_call.1} parent=5 // pred_check
      _
    $region38: #{tpu_custom_call.1} parent=5 // pred_check_branch
      %215 = sbr.rel (%p212) target = $region40
    $region39: #{tpu_custom_call.1} parent=5 // pred_region
      %s216 = ssub.s32 %s11, 1
      %s217 = smul.u32 8, %s16
      %p218 = scmp.lt.s32.totalorder %s217, 15
      %s219 = scalar_select %p218, %s217, 15
      %s220 = smul.addr %s219, 8
      %s221 = scalar_lea.vmem %s0, %s220
      %p222 = pneg %p37
      %p223 = pneg %p34
      %s224 = smul.u32 8, %s16
      %p225 = scmp.lt.s32.totalorder %s224, 15
      %s226 = scalar_select %p225, %s224, 15
      %s227 = smul.addr %s226, 8
      %s228 = scalar_lea.vmem %s1, %s227
      %p229 = pneg %p63
      %p230 = pneg %p60
      %s231 = smul.u32 8, %s16
      %p232 = scmp.lt.s32.totalorder %s231, 15
      %s233 = scalar_select %p232, %s231, 15
      %s234 = smul.addr %s233, 2
      %s235 = smul.addr %s234, 8
      %s236 = scalar_lea.vmem %s2, %s235
      %p237 = pneg %p89
      %p238 = pneg %p86
      %p239 = pneg %p110
      %p240 = pneg %p107
      %p241 = pneg %p131
      %p242 = pneg %p128
      %p243 = pneg %p157
      %p244 = pneg %p154
      %s245 = smul.u32 8, %s16
      %p246 = scmp.lt.s32.totalorder %s245, 15
      %s247 = scalar_select %p246, %s245, 15
      %s248 = smul.addr %s247, 2
      %s249 = smul.addr %s248, 8
      %s250 = scalar_lea.vmem %s5, %s249
      %s251 = smul.u32 8, %s16
      %p252 = scmp.lt.s32.totalorder %s251, 15
      %s253 = scalar_select %p252, %s251, 15
      %s254 = smul.addr %s253, 8
      %s255 = scalar_lea.vmem %s0, %s254
      %s256 = smul.u32 8, %s16
      %s257 = smul.u32 8, %s16
      %p258 = scmp.lt.s32.totalorder %s257, 15
      %s259 = scalar_select %p258, %s257, 15
      %s260 = smul.addr %s259, 8
      %s261 = scalar_lea.vmem %s1, %s260
      %s262 = smul.u32 8, %s16
      %s263 = smul.u32 8, %s16
      %p264 = scmp.lt.s32.totalorder %s263, 15
      %s265 = scalar_select %p264, %s263, 15
      %s266 = smul.addr %s265, 2
      %s267 = smul.addr %s266, 8
      %s268 = scalar_lea.vmem %s2, %s267
      %s269 = smul.u32 8, %s16
      %s270 = smul.u32 8, %s16
      %p271 = scmp.lt.s32.totalorder %s270, 15
      %s272 = scalar_select %p271, %s270, 15
      %s273 = smul.addr %s272, 2
      %s274 = smul.addr %s273, 8
      %s275 = scalar_lea.vmem %s5, %s274
      %s276 = smul.u32 8, %s16
      %v277 = vld [vmem:[%s255] sm:$0xff]
      %v278 = vld [vmem:[%s255 + $0x8] sm:$0xff]
      %v279 = vld [vmem:[%s255 + $0x10] sm:$0xff]
      %v280 = vld [vmem:[%s255 + $0x18] sm:$0xff]
      %v281 = vld [vmem:[%s255 + $0x20] sm:$0xff]
      %v282 = vld [vmem:[%s255 + $0x28] sm:$0xff]
      %v283 = vld [vmem:[%s255 + $0x30] sm:$0xff]
      %v284 = vld [vmem:[%s255 + $0x38] sm:$0xff]
      %v285 = vld [vmem:[%s261] sm:$0xff]
      %v286 = vld [vmem:[%s261 + $0x8] sm:$0xff]
      %v287 = vld [vmem:[%s261 + $0x10] sm:$0xff]
      %v288 = vld [vmem:[%s261 + $0x18] sm:$0xff]
      %v289 = vld [vmem:[%s261 + $0x20] sm:$0xff]
      %v290 = vld [vmem:[%s261 + $0x28] sm:$0xff]
      %v291 = vld [vmem:[%s261 + $0x30] sm:$0xff]
      %v292 = vld [vmem:[%s261 + $0x38] sm:$0xff]
      %v293 = vld [vmem:[%s268] sm:$0xff]
      %v294 = vld [vmem:[%s268 + $0x8] sm:$0xff]
      %v295 = vld [vmem:[%s268 + $0x10] sm:$0xff]
      %v296 = vld [vmem:[%s268 + $0x18] sm:$0xff]
      %v297 = vld [vmem:[%s268 + $0x20] sm:$0xff]
      %v298 = vld [vmem:[%s268 + $0x28] sm:$0xff]
      %v299 = vld [vmem:[%s268 + $0x30] sm:$0xff]
      %v300 = vld [vmem:[%s268 + $0x38] sm:$0xff]
      %v301 = vld [vmem:[%s268 + $0x40] sm:$0xff]
      %v302 = vld [vmem:[%s268 + $0x48] sm:$0xff]
      %v303 = vld [vmem:[%s268 + $0x50] sm:$0xff]
      %v304 = vld [vmem:[%s268 + $0x58] sm:$0xff]
      %v305 = vld [vmem:[%s268 + $0x60] sm:$0xff]
      %v306 = vld [vmem:[%s268 + $0x68] sm:$0xff]
      %v307 = vld [vmem:[%s268 + $0x70] sm:$0xff]
      %v308 = vld [vmem:[%s268 + $0x78] sm:$0xff]
      %v309 = vld [vmem:[%s3] sm:$0x1]
      %311 = vset.pattern.permute.xlu0 0
      %312 = vperm.xlu0 %311, %v277
      %v313 = vpop.permute.xlu0 %312
      %316 = vset.pattern.permute.xlu0 0
      %317 = vperm.xlu0 %316, %v278
      %v318 = vpop.permute.xlu0 %317
      %321 = vset.pattern.permute.xlu0 0
      %322 = vperm.xlu0 %321, %v279
      %v323 = vpop.permute.xlu0 %322
      %326 = vset.pattern.permute.xlu0 0
      %327 = vperm.xlu0 %326, %v280
      %v328 = vpop.permute.xlu0 %327
      %331 = vset.pattern.permute.xlu0 0
      %332 = vperm.xlu0 %331, %v281
      %v333 = vpop.permute.xlu0 %332
      %336 = vset.pattern.permute.xlu0 0
      %337 = vperm.xlu0 %336, %v282
      %v338 = vpop.permute.xlu0 %337
      %341 = vset.pattern.permute.xlu0 0
      %342 = vperm.xlu0 %341, %v283
      %v343 = vpop.permute.xlu0 %342
      %346 = vset.pattern.permute.xlu0 0
      %347 = vperm.xlu0 %346, %v284
      %v348 = vpop.permute.xlu0 %347
      %v350 = vperm.slane %v309, 0
      %v351 = vmul.f32 %v313, %v350
      %v352 = vmul.f32 %v318, %v350
      %v353 = vmul.f32 %v323, %v350
      %v354 = vmul.f32 %v328, %v350
      %v355 = vmul.f32 %v333, %v350
      %v356 = vmul.f32 %v338, %v350
      %v357 = vmul.f32 %v343, %v350
      %v358 = vmul.f32 %v348, %v350
      %v359 = vld [vmem:[%s3 + $0x1] sm:$0x1]
      %360 = vset.pattern.permute.xlu0 1
      %361 = vperm.xlu0 %360, %v277
      %v362 = vpop.permute.xlu0 %361
      %364 = vset.pattern.permute.xlu0 1
      %365 = vperm.xlu0 %364, %v278
      %v366 = vpop.permute.xlu0 %365
      %368 = vset.pattern.permute.xlu0 1
      %369 = vperm.xlu0 %368, %v279
      %v370 = vpop.permute.xlu0 %369
      %372 = vset.pattern.permute.xlu0 1
      %373 = vperm.xlu0 %372, %v280
      %v374 = vpop.permute.xlu0 %373
      %376 = vset.pattern.permute.xlu0 1
      %377 = vperm.xlu0 %376, %v281
      %v378 = vpop.permute.xlu0 %377
      %380 = vset.pattern.permute.xlu0 1
      %381 = vperm.xlu0 %380, %v282
      %v382 = vpop.permute.xlu0 %381
      %384 = vset.pattern.permute.xlu0 1
      %385 = vperm.xlu0 %384, %v283
      %v386 = vpop.permute.xlu0 %385
      %388 = vset.pattern.permute.xlu0 1
      %389 = vperm.xlu0 %388, %v284
      %v390 = vpop.permute.xlu0 %389
      %v392 = vperm.slane %v359, 0
      %v393 = vmul.f32 %v362, %v392
      %v394 = vmul.f32 %v366, %v392
      %v395 = vmul.f32 %v370, %v392
      %v396 = vmul.f32 %v374, %v392
      %v397 = vmul.f32 %v378, %v392
      %v398 = vmul.f32 %v382, %v392
      %v399 = vmul.f32 %v386, %v392
      %v400 = vmul.f32 %v390, %v392
      %v401 = vadd.f32 %v351, %v393
      %v402 = vadd.f32 %v352, %v394
      %v403 = vadd.f32 %v353, %v395
      %v404 = vadd.f32 %v354, %v396
      %v405 = vadd.f32 %v355, %v397
      %v406 = vadd.f32 %v356, %v398
      %v407 = vadd.f32 %v357, %v399
      %v408 = vadd.f32 %v358, %v400
      %v409 = vld [vmem:[%s3 + $0x8] sm:$0x1]
      %411 = vset.pattern.permute.xlu0 0
      %412 = vperm.xlu0 %411, %v285
      %v413 = vpop.permute.xlu0 %412
      %416 = vset.pattern.permute.xlu0 0
      %417 = vperm.xlu0 %416, %v286
      %v418 = vpop.permute.xlu0 %417
      %421 = vset.pattern.permute.xlu0 0
      %422 = vperm.xlu0 %421, %v287
      %v423 = vpop.permute.xlu0 %422
      %426 = vset.pattern.permute.xlu0 0
      %427 = vperm.xlu0 %426, %v288
      %v428 = vpop.permute.xlu0 %427
      %431 = vset.pattern.permute.xlu0 0
      %432 = vperm.xlu0 %431, %v289
      %v433 = vpop.permute.xlu0 %432
      %436 = vset.pattern.permute.xlu0 0
      %437 = vperm.xlu0 %436, %v290
      %v438 = vpop.permute.xlu0 %437
      %441 = vset.pattern.permute.xlu0 0
      %442 = vperm.xlu0 %441, %v291
      %v443 = vpop.permute.xlu0 %442
      %446 = vset.pattern.permute.xlu0 0
      %447 = vperm.xlu0 %446, %v292
      %v448 = vpop.permute.xlu0 %447
      %v450 = vperm.slane %v409, 0
      %v451 = vmul.f32 %v413, %v450
      %v452 = vmul.f32 %v418, %v450
      %v453 = vmul.f32 %v423, %v450
      %v454 = vmul.f32 %v428, %v450
      %v455 = vmul.f32 %v433, %v450
      %v456 = vmul.f32 %v438, %v450
      %v457 = vmul.f32 %v443, %v450
      %v458 = vmul.f32 %v448, %v450
      %v459 = vadd.f32 %v401, %v451
      %v460 = vadd.f32 %v402, %v452
      %v461 = vadd.f32 %v403, %v453
      %v462 = vadd.f32 %v404, %v454
      %v463 = vadd.f32 %v405, %v455
      %v464 = vadd.f32 %v406, %v456
      %v465 = vadd.f32 %v407, %v457
      %v466 = vadd.f32 %v408, %v458
      %v467 = vld [vmem:[%s3 + $0x10] sm:$0x1]
      %v468 = vperm.slane %v467, 0
      %v469 = vadd.f32 %v459, %v468
      %v470 = vadd.f32 %v460, %v468
      %v471 = vadd.f32 %v461, %v468
      %v472 = vadd.f32 %v462, %v468
      %v473 = vadd.f32 %v463, %v468
      %v474 = vadd.f32 %v464, %v468
      %v475 = vadd.f32 %v465, %v468
      %v476 = vadd.f32 %v466, %v468
      %v477 = vmax.f32 %v469, 0.0
      %v478 = vmax.f32 %v470, 0.0
      %v479 = vmax.f32 %v471, 0.0
      %v480 = vmax.f32 %v472, 0.0
      %v481 = vmax.f32 %v473, 0.0
      %v482 = vmax.f32 %v474, 0.0
      %v483 = vmax.f32 %v475, 0.0
      %v484 = vmax.f32 %v476, 0.0
      %v485 = vld [vmem:[%s3 + $0x18] sm:$0xff]
      %v486 = vld [vmem:[%s3 + $0x20] sm:$0xff]
      %v487 = vld [vmem:[%s3 + $0x28] sm:$0xff]
      %v488 = vld [vmem:[%s3 + $0x30] sm:$0xff]
      %v489 = vld [vmem:[%s3 + $0x38] sm:$0x1]
      %v490 = vperm.slane %v489, 0
      %vm491 = vcmask 261120
      %v493 = vsel %vm491, %v477, 0
      %v496 = vsel %vm491, %v478, 0
      %v499 = vsel %vm491, %v479, 0
      %v502 = vsel %vm491, %v480, 0
      %v505 = vsel %vm491, %v481, 0
      %v508 = vsel %vm491, %v482, 0
      %v511 = vsel %vm491, %v483, 0
      %v514 = vsel %vm491, %v484, 0
      %516 = vmatpush.msra.mxu0 0.0
      %517 = vmatpush.msra.mxu0 0.0
      %518 = vmatpush.msra.mxu0 0.0
      %519 = vmatpush.msra.mxu0 0.0
      %520 = vmatpush.msra.mxu0 0.0
      %521 = vmatpush.msra.mxu0 0.0
      %522 = vmatpush.msra.mxu0 0.0
      %523 = vmatpush.msra.mxu0 0.0
      %524 = vmatpush.msra.mxu0 0.0
      %525 = vmatpush.msra.mxu0 0.0
      %526 = vmatpush.msra.mxu0 0.0
      %527 = vmatpush.msra.mxu0 0.0
      %528 = vmatpush.msra.mxu0 %v488
      %529 = vmatpush.msra.mxu0 %v487
      %530 = vmatpush.msra.mxu0 %v486
      %531 = vmatpush.msra.mxu0 %v485
      %532 = vmatmul.f32.gmra.mxu0 %v493
      %v533 = vpop.f32.mrf.mxu0
      %v534 = vadd.f32 %v490, %v533
      %535 = vmatmul.f32.gmra.mxu0 %v496
      %v536 = vpop.f32.mrf.mxu0
      %v537 = vadd.f32 %v490, %v536
      %538 = vmatmul.f32.gmra.mxu0 %v499
      %v539 = vpop.f32.mrf.mxu0
      %v540 = vadd.f32 %v490, %v539
      %541 = vmatmul.f32.gmra.mxu0 %v502
      %v542 = vpop.f32.mrf.mxu0
      %v543 = vadd.f32 %v490, %v542
      %544 = vmatmul.f32.gmra.mxu0 %v505
      %v545 = vpop.f32.mrf.mxu0
      %v546 = vadd.f32 %v490, %v545
      %547 = vmatmul.f32.gmra.mxu0 %v508
      %v548 = vpop.f32.mrf.mxu0
      %v549 = vadd.f32 %v490, %v548
      %550 = vmatmul.f32.gmra.mxu0 %v511
      %v551 = vpop.f32.mrf.mxu0
      %v552 = vadd.f32 %v490, %v551
      %553 = vmatmul.f32.gmra.mxu0 %v514
      %v554 = vpop.f32.mrf.mxu0
      %v555 = vadd.f32 %v490, %v554
      %556 = vdwg.mxu0
      %v557 = vmax.f32 %v534, 0.0
      %v558 = vmax.f32 %v537, 0.0
      %v559 = vmax.f32 %v540, 0.0
      %v560 = vmax.f32 %v543, 0.0
      %v561 = vmax.f32 %v546, 0.0
      %v562 = vmax.f32 %v549, 0.0
      %v563 = vmax.f32 %v552, 0.0
      %v564 = vmax.f32 %v555, 0.0
      %v565 = vld [vmem:[%s3 + $0x40] sm:$0xff]
      %v566 = vld [vmem:[%s3 + $0x48] sm:$0xff]
      %v567 = vld [vmem:[%s3 + $0x50] sm:$0xff]
      %v568 = vld [vmem:[%s3 + $0x58] sm:$0xff]
      %v569 = vld [vmem:[%s3 + $0x60] sm:$0x1]
      %v570 = vperm.slane %v569, 0
      %v572 = vsel %vm491, %v557, 0
      %v575 = vsel %vm491, %v558, 0
      %v578 = vsel %vm491, %v559, 0
      %v581 = vsel %vm491, %v560, 0
      %v584 = vsel %vm491, %v561, 0
      %v587 = vsel %vm491, %v562, 0
      %v590 = vsel %vm491, %v563, 0
      %v593 = vsel %vm491, %v564, 0
      %595 = vmatpush.msra.mxu0 0.0
      %596 = vmatpush.msra.mxu0 0.0
      %597 = vmatpush.msra.mxu0 0.0
      %598 = vmatpush.msra.mxu0 0.0
      %599 = vmatpush.msra.mxu0 0.0
      %600 = vmatpush.msra.mxu0 0.0
      %601 = vmatpush.msra.mxu0 0.0
      %602 = vmatpush.msra.mxu0 0.0
      %603 = vmatpush.msra.mxu0 0.0
      %604 = vmatpush.msra.mxu0 0.0
      %605 = vmatpush.msra.mxu0 0.0
      %606 = vmatpush.msra.mxu0 0.0
      %607 = vmatpush.msra.mxu0 %v568
      %608 = vmatpush.msra.mxu0 %v567
      %609 = vmatpush.msra.mxu0 %v566
      %610 = vmatpush.msra.mxu0 %v565
      %611 = vmatmul.f32.gmra.mxu0 %v572
      %v612 = vpop.f32.mrf.mxu0
      %v613 = vadd.f32 %v570, %v612
      %614 = vmatmul.f32.gmra.mxu0 %v575
      %v615 = vpop.f32.mrf.mxu0
      %v616 = vadd.f32 %v570, %v615
      %617 = vmatmul.f32.gmra.mxu0 %v578
      %v618 = vpop.f32.mrf.mxu0
      %v619 = vadd.f32 %v570, %v618
      %620 = vmatmul.f32.gmra.mxu0 %v581
      %v621 = vpop.f32.mrf.mxu0
      %v622 = vadd.f32 %v570, %v621
      %623 = vmatmul.f32.gmra.mxu0 %v584
      %v624 = vpop.f32.mrf.mxu0
      %v625 = vadd.f32 %v570, %v624
      %626 = vmatmul.f32.gmra.mxu0 %v587
      %v627 = vpop.f32.mrf.mxu0
      %v628 = vadd.f32 %v570, %v627
      %629 = vmatmul.f32.gmra.mxu0 %v590
      %v630 = vpop.f32.mrf.mxu0
      %v631 = vadd.f32 %v570, %v630
      %632 = vmatmul.f32.gmra.mxu0 %v593
      %v633 = vpop.f32.mrf.mxu0
      %v634 = vadd.f32 %v570, %v633
      %635 = vdwg.mxu0
      %v636 = vmax.f32 %v613, 0.0
      %v637 = vmax.f32 %v616, 0.0
      %v638 = vmax.f32 %v619, 0.0
      %v639 = vmax.f32 %v622, 0.0
      %v640 = vmax.f32 %v625, 0.0
      %v641 = vmax.f32 %v628, 0.0
      %v642 = vmax.f32 %v631, 0.0
      %v643 = vmax.f32 %v634, 0.0
      %v644 = vld [vmem:[%s3 + $0x68] sm:$0xff]
      %v645 = vld [vmem:[%s3 + $0x70] sm:$0xff]
      %v646 = vld [vmem:[%s3 + $0x78] sm:$0xff]
      %v647 = vld [vmem:[%s3 + $0x80] sm:$0xff]
      %v648 = vld [vmem:[%s3 + $0x88] sm:$0x1]
      %v649 = vperm.slane %v648, 0
      %v651 = vsel %vm491, %v636, 0
      %v654 = vsel %vm491, %v637, 0
      %v657 = vsel %vm491, %v638, 0
      %v660 = vsel %vm491, %v639, 0
      %v663 = vsel %vm491, %v640, 0
      %v666 = vsel %vm491, %v641, 0
      %v669 = vsel %vm491, %v642, 0
      %v672 = vsel %vm491, %v643, 0
      %674 = vmatpush.msra.mxu0 0.0
      %675 = vmatpush.msra.mxu0 0.0
      %676 = vmatpush.msra.mxu0 0.0
      %677 = vmatpush.msra.mxu0 0.0
      %678 = vmatpush.msra.mxu0 0.0
      %679 = vmatpush.msra.mxu0 0.0
      %680 = vmatpush.msra.mxu0 0.0
      %681 = vmatpush.msra.mxu0 0.0
      %682 = vmatpush.msra.mxu0 0.0
      %683 = vmatpush.msra.mxu0 0.0
      %684 = vmatpush.msra.mxu0 0.0
      %685 = vmatpush.msra.mxu0 0.0
      %686 = vmatpush.msra.mxu0 %v647
      %687 = vmatpush.msra.mxu0 %v646
      %688 = vmatpush.msra.mxu0 %v645
      %689 = vmatpush.msra.mxu0 %v644
      %690 = vmatmul.f32.gmra.mxu0 %v651
      %v691 = vpop.f32.mrf.mxu0
      %v692 = vadd.f32 %v649, %v691
      %693 = vmatmul.f32.gmra.mxu0 %v654
      %v694 = vpop.f32.mrf.mxu0
      %v695 = vadd.f32 %v649, %v694
      %696 = vmatmul.f32.gmra.mxu0 %v657
      %v697 = vpop.f32.mrf.mxu0
      %v698 = vadd.f32 %v649, %v697
      %699 = vmatmul.f32.gmra.mxu0 %v660
      %v700 = vpop.f32.mrf.mxu0
      %v701 = vadd.f32 %v649, %v700
      %702 = vmatmul.f32.gmra.mxu0 %v663
      %v703 = vpop.f32.mrf.mxu0
      %v704 = vadd.f32 %v649, %v703
      %705 = vmatmul.f32.gmra.mxu0 %v666
      %v706 = vpop.f32.mrf.mxu0
      %v707 = vadd.f32 %v649, %v706
      %708 = vmatmul.f32.gmra.mxu0 %v669
      %v709 = vpop.f32.mrf.mxu0
      %v710 = vadd.f32 %v649, %v709
      %711 = vmatmul.f32.gmra.mxu0 %v672
      %v712 = vpop.f32.mrf.mxu0
      %v713 = vadd.f32 %v649, %v712
      %714 = vdwg.mxu0
      %v715 = vsel %vm491, %v692, 0.0
      %v716 = vrot.slane %v715, 4
      %v717 = vadd.f32 %v715, %v716
      %v718 = vrot.slane %v717, 2
      %v719 = vadd.f32 %v717, %v718
      %v720 = vrot.slane %v719, 1
      %v721 = vadd.f32 %v719, %v720
      %v722 = vsel %vm491, %v695, 0.0
      %v723 = vrot.slane %v722, 4
      %v724 = vadd.f32 %v722, %v723
      %v725 = vrot.slane %v724, 2
      %v726 = vadd.f32 %v724, %v725
      %v727 = vrot.slane %v726, 1
      %v728 = vadd.f32 %v726, %v727
      %v729 = vsel %vm491, %v698, 0.0
      %v730 = vrot.slane %v729, 4
      %v731 = vadd.f32 %v729, %v730
      %v732 = vrot.slane %v731, 2
      %v733 = vadd.f32 %v731, %v732
      %v734 = vrot.slane %v733, 1
      %v735 = vadd.f32 %v733, %v734
      %v736 = vsel %vm491, %v701, 0.0
      %v737 = vrot.slane %v736, 4
      %v738 = vadd.f32 %v736, %v737
      %v739 = vrot.slane %v738, 2
      %v740 = vadd.f32 %v738, %v739
      %v741 = vrot.slane %v740, 1
      %v742 = vadd.f32 %v740, %v741
      %v743 = vsel %vm491, %v704, 0.0
      %v744 = vrot.slane %v743, 4
      %v745 = vadd.f32 %v743, %v744
      %v746 = vrot.slane %v745, 2
      %v747 = vadd.f32 %v745, %v746
      %v748 = vrot.slane %v747, 1
      %v749 = vadd.f32 %v747, %v748
      %v750 = vsel %vm491, %v707, 0.0
      %v751 = vrot.slane %v750, 4
      %v752 = vadd.f32 %v750, %v751
      %v753 = vrot.slane %v752, 2
      %v754 = vadd.f32 %v752, %v753
      %v755 = vrot.slane %v754, 1
      %v756 = vadd.f32 %v754, %v755
      %v757 = vsel %vm491, %v710, 0.0
      %v758 = vrot.slane %v757, 4
      %v759 = vadd.f32 %v757, %v758
      %v760 = vrot.slane %v759, 2
      %v761 = vadd.f32 %v759, %v760
      %v762 = vrot.slane %v761, 1
      %v763 = vadd.f32 %v761, %v762
      %v764 = vsel %vm491, %v713, 0.0
      %v765 = vrot.slane %v764, 4
      %v766 = vadd.f32 %v764, %v765
      %v767 = vrot.slane %v766, 2
      %v768 = vadd.f32 %v766, %v767
      %v769 = vrot.slane %v768, 1
      %v770 = vadd.f32 %v768, %v769
      %v771 = vrcp.pop 8.0
      %v772 = vmul.f32 8.0, %v771
      %v773 = vsub.f32 1.0, %v772
      %v774 = vmul.f32 %v771, %v773
      %v775 = vadd.f32 %v771, %v774
      %vm776 = vweird.f32 %v771
      %v777 = vsel %vm776, %v771, %v775
      %v778 = vmul.f32 %v721, %v777
      %v779 = vmul.f32 %v728, %v777
      %v780 = vmul.f32 %v735, %v777
      %v781 = vmul.f32 %v742, %v777
      %v782 = vmul.f32 %v749, %v777
      %v783 = vmul.f32 %v756, %v777
      %v784 = vmul.f32 %v763, %v777
      %v785 = vmul.f32 %v770, %v777
      %v786 = vld [vmem:[%s3 + $0x98] sm:$0xff]
      %v787 = vld [vmem:[%s3 + $0xa0] sm:$0xff]
      %v788 = vld [vmem:[%s3 + $0xa8] sm:$0xff]
      %v789 = vld [vmem:[%s3 + $0xb0] sm:$0xff]
      %vm798 = vcmask 1041409
      %v799 = vsel %vm798, %v779, %v778
      %vm800 = vcmask 1042434
      %v801 = vsel %vm800, %v780, %v799
      %vm802 = vcmask 1043459
      %v803 = vsel %vm802, %v781, %v801
      %vm804 = vcmask 1044484
      %v805 = vsel %vm804, %v782, %v803
      %vm806 = vcmask 1045509
      %v807 = vsel %vm806, %v783, %v805
      %vm808 = vcmask 1046534
      %v809 = vsel %vm808, %v784, %v807
      %vm810 = vcmask 1047559
      %v811 = vsel %vm810, %v785, %v809
      %v812 = vsel %vm491, %v811, 0
      %814 = vmatpush.msra.mxu0 0.0
      %815 = vmatpush.msra.mxu0 0.0
      %816 = vmatpush.msra.mxu0 0.0
      %817 = vmatpush.msra.mxu0 0.0
      %818 = vmatpush.msra.mxu0 0.0
      %819 = vmatpush.msra.mxu0 0.0
      %820 = vmatpush.msra.mxu0 0.0
      %821 = vmatpush.msra.mxu0 0.0
      %822 = vmatpush.msra.mxu0 0.0
      %823 = vmatpush.msra.mxu0 0.0
      %824 = vmatpush.msra.mxu0 0.0
      %825 = vmatpush.msra.mxu0 0.0
      %826 = vmatpush.msra.mxu0 %v789
      %827 = vmatpush.msra.mxu0 %v788
      %828 = vmatpush.msra.mxu0 %v787
      %829 = vmatpush.msra.mxu0 %v786
      %830 = vmatmul.f32.gmra.mxu0 %v812
      %v831 = vpop.f32.mrf.mxu0
      %v832 = vadd.f32 0.0, %v831
      %833 = vdwg.mxu0
      %v834 = vld [vmem:[%s3 + $0x90] sm:$0x1]
      %836 = vset.pattern.permute.xlu0 0
      %837 = vperm.xlu0 %836, %v293
      %v838 = vpop.permute.xlu0 %837
      %841 = vset.pattern.permute.xlu0 0
      %842 = vperm.xlu0 %841, %v294
      %v843 = vpop.permute.xlu0 %842
      %846 = vset.pattern.permute.xlu0 0
      %847 = vperm.xlu0 %846, %v295
      %v848 = vpop.permute.xlu0 %847
      %851 = vset.pattern.permute.xlu0 0
      %852 = vperm.xlu0 %851, %v296
      %v853 = vpop.permute.xlu0 %852
      %856 = vset.pattern.permute.xlu0 0
      %857 = vperm.xlu0 %856, %v297
      %v858 = vpop.permute.xlu0 %857
      %861 = vset.pattern.permute.xlu0 0
      %862 = vperm.xlu0 %861, %v298
      %v863 = vpop.permute.xlu0 %862
      %866 = vset.pattern.permute.xlu0 0
      %867 = vperm.xlu0 %866, %v299
      %v868 = vpop.permute.xlu0 %867
      %871 = vset.pattern.permute.xlu0 0
      %872 = vperm.xlu0 %871, %v300
      %v873 = vpop.permute.xlu0 %872
      %876 = vset.pattern.permute.xlu0 0
      %877 = vperm.xlu0 %876, %v301
      %v878 = vpop.permute.xlu0 %877
      %881 = vset.pattern.permute.xlu0 0
      %882 = vperm.xlu0 %881, %v302
      %v883 = vpop.permute.xlu0 %882
      %886 = vset.pattern.permute.xlu0 0
      %887 = vperm.xlu0 %886, %v303
      %v888 = vpop.permute.xlu0 %887
      %891 = vset.pattern.permute.xlu0 0
      %892 = vperm.xlu0 %891, %v304
      %v893 = vpop.permute.xlu0 %892
      %896 = vset.pattern.permute.xlu0 0
      %897 = vperm.xlu0 %896, %v305
      %v898 = vpop.permute.xlu0 %897
      %901 = vset.pattern.permute.xlu0 0
      %902 = vperm.xlu0 %901, %v306
      %v903 = vpop.permute.xlu0 %902
      %906 = vset.pattern.permute.xlu0 0
      %907 = vperm.xlu0 %906, %v307
      %v908 = vpop.permute.xlu0 %907
      %911 = vset.pattern.permute.xlu0 0
      %912 = vperm.xlu0 %911, %v308
      %v913 = vpop.permute.xlu0 %912
      %v915 = vperm.slane %v834, 0
      %v916 = vmul.f32 %v838, %v915
      %v917 = vmul.f32 %v843, %v915
      %v918 = vmul.f32 %v848, %v915
      %v919 = vmul.f32 %v853, %v915
      %v920 = vmul.f32 %v858, %v915
      %v921 = vmul.f32 %v863, %v915
      %v922 = vmul.f32 %v868, %v915
      %v923 = vmul.f32 %v873, %v915
      %v924 = vmul.f32 %v878, %v915
      %v925 = vmul.f32 %v883, %v915
      %v926 = vmul.f32 %v888, %v915
      %v927 = vmul.f32 %v893, %v915
      %v928 = vmul.f32 %v898, %v915
      %v929 = vmul.f32 %v903, %v915
      %v930 = vmul.f32 %v908, %v915
      %v931 = vmul.f32 %v913, %v915
      %v932 = vld [vmem:[%s3 + $0x91] sm:$0x1]
      %933 = vset.pattern.permute.xlu0 1
      %934 = vperm.xlu0 %933, %v293
      %v935 = vpop.permute.xlu0 %934
      %937 = vset.pattern.permute.xlu0 1
      %938 = vperm.xlu0 %937, %v294
      %v939 = vpop.permute.xlu0 %938
      %941 = vset.pattern.permute.xlu0 1
      %942 = vperm.xlu0 %941, %v295
      %v943 = vpop.permute.xlu0 %942
      %945 = vset.pattern.permute.xlu0 1
      %946 = vperm.xlu0 %945, %v296
      %v947 = vpop.permute.xlu0 %946
      %949 = vset.pattern.permute.xlu0 1
      %950 = vperm.xlu0 %949, %v297
      %v951 = vpop.permute.xlu0 %950
      %953 = vset.pattern.permute.xlu0 1
      %954 = vperm.xlu0 %953, %v298
      %v955 = vpop.permute.xlu0 %954
      %957 = vset.pattern.permute.xlu0 1
      %958 = vperm.xlu0 %957, %v299
      %v959 = vpop.permute.xlu0 %958
      %961 = vset.pattern.permute.xlu0 1
      %962 = vperm.xlu0 %961, %v300
      %v963 = vpop.permute.xlu0 %962
      %965 = vset.pattern.permute.xlu0 1
      %966 = vperm.xlu0 %965, %v301
      %v967 = vpop.permute.xlu0 %966
      %969 = vset.pattern.permute.xlu0 1
      %970 = vperm.xlu0 %969, %v302
      %v971 = vpop.permute.xlu0 %970
      %973 = vset.pattern.permute.xlu0 1
      %974 = vperm.xlu0 %973, %v303
      %v975 = vpop.permute.xlu0 %974
      %977 = vset.pattern.permute.xlu0 1
      %978 = vperm.xlu0 %977, %v304
      %v979 = vpop.permute.xlu0 %978
      %981 = vset.pattern.permute.xlu0 1
      %982 = vperm.xlu0 %981, %v305
      %v983 = vpop.permute.xlu0 %982
      %985 = vset.pattern.permute.xlu0 1
      %986 = vperm.xlu0 %985, %v306
      %v987 = vpop.permute.xlu0 %986
      %989 = vset.pattern.permute.xlu0 1
      %990 = vperm.xlu0 %989, %v307
      %v991 = vpop.permute.xlu0 %990
      %993 = vset.pattern.permute.xlu0 1
      %994 = vperm.xlu0 %993, %v308
      %v995 = vpop.permute.xlu0 %994
      %v997 = vperm.slane %v932, 0
      %v998 = vmul.f32 %v935, %v997
      %v999 = vmul.f32 %v939, %v997
      %v1000 = vmul.f32 %v943, %v997
      %v1001 = vmul.f32 %v947, %v997
      %v1002 = vmul.f32 %v951, %v997
      %v1003 = vmul.f32 %v955, %v997
      %v1004 = vmul.f32 %v959, %v997
      %v1005 = vmul.f32 %v963, %v997
      %v1006 = vmul.f32 %v967, %v997
      %v1007 = vmul.f32 %v971, %v997
      %v1008 = vmul.f32 %v975, %v997
      %v1009 = vmul.f32 %v979, %v997
      %v1010 = vmul.f32 %v983, %v997
      %v1011 = vmul.f32 %v987, %v997
      %v1012 = vmul.f32 %v991, %v997
      %v1013 = vmul.f32 %v995, %v997
      %v1014 = vadd.f32 %v916, %v998
      %v1015 = vadd.f32 %v917, %v999
      %v1016 = vadd.f32 %v918, %v1000
      %v1017 = vadd.f32 %v919, %v1001
      %v1018 = vadd.f32 %v920, %v1002
      %v1019 = vadd.f32 %v921, %v1003
      %v1020 = vadd.f32 %v922, %v1004
      %v1021 = vadd.f32 %v923, %v1005
      %v1022 = vadd.f32 %v924, %v1006
      %v1023 = vadd.f32 %v925, %v1007
      %v1024 = vadd.f32 %v926, %v1008
      %v1025 = vadd.f32 %v927, %v1009
      %v1026 = vadd.f32 %v928, %v1010
      %v1027 = vadd.f32 %v929, %v1011
      %v1028 = vadd.f32 %v930, %v1012
      %v1029 = vadd.f32 %v931, %v1013
      %v1031 = vrot.slane %v832, 1
      %v1032 = vrot.slane %v832, 2
      %v1033 = vrot.slane %v832, 3
      %v1034 = vrot.slane %v832, 4
      %v1035 = vrot.slane %v832, 5
      %v1036 = vrot.slane %v832, 6
      %v1037 = vrot.slane %v832, 7
      %v1038 = vperm.slane %v832, 0
      %v1039 = vperm.slane %v1031, 0
      %v1040 = vperm.slane %v1032, 0
      %v1041 = vperm.slane %v1033, 0
      %v1042 = vperm.slane %v1034, 0
      %v1043 = vperm.slane %v1035, 0
      %v1044 = vperm.slane %v1036, 0
      %v1045 = vperm.slane %v1037, 0
      %v1054 = vadd.f32 %v1014, %v1038
      %v1055 = vadd.f32 %v1015, %v1038
      %v1056 = vadd.f32 %v1016, %v1039
      %v1057 = vadd.f32 %v1017, %v1039
      %v1058 = vadd.f32 %v1018, %v1040
      %v1059 = vadd.f32 %v1019, %v1040
      %v1060 = vadd.f32 %v1020, %v1041
      %v1061 = vadd.f32 %v1021, %v1041
      %v1062 = vadd.f32 %v1022, %v1042
      %v1063 = vadd.f32 %v1023, %v1042
      %v1064 = vadd.f32 %v1024, %v1043
      %v1065 = vadd.f32 %v1025, %v1043
      %v1066 = vadd.f32 %v1026, %v1044
      %v1067 = vadd.f32 %v1027, %v1044
      %v1068 = vadd.f32 %v1028, %v1045
      %v1069 = vadd.f32 %v1029, %v1045
      %v1070 = vld [vmem:[%s3 + $0xb8] sm:$0x1]
      %v1071 = vperm.slane %v1070, 0
      %v1072 = vadd.f32 %v1054, %v1071
      %v1073 = vadd.f32 %v1055, %v1071
      %v1074 = vadd.f32 %v1056, %v1071
      %v1075 = vadd.f32 %v1057, %v1071
      %v1076 = vadd.f32 %v1058, %v1071
      %v1077 = vadd.f32 %v1059, %v1071
      %v1078 = vadd.f32 %v1060, %v1071
      %v1079 = vadd.f32 %v1061, %v1071
      %v1080 = vadd.f32 %v1062, %v1071
      %v1081 = vadd.f32 %v1063, %v1071
      %v1082 = vadd.f32 %v1064, %v1071
      %v1083 = vadd.f32 %v1065, %v1071
      %v1084 = vadd.f32 %v1066, %v1071
      %v1085 = vadd.f32 %v1067, %v1071
      %v1086 = vadd.f32 %v1068, %v1071
      %v1087 = vadd.f32 %v1069, %v1071
      %v1088 = vmax.f32 %v1072, 0.0
      %v1089 = vmax.f32 %v1073, 0.0
      %v1090 = vmax.f32 %v1074, 0.0
      %v1091 = vmax.f32 %v1075, 0.0
      %v1092 = vmax.f32 %v1076, 0.0
      %v1093 = vmax.f32 %v1077, 0.0
      %v1094 = vmax.f32 %v1078, 0.0
      %v1095 = vmax.f32 %v1079, 0.0
      %v1096 = vmax.f32 %v1080, 0.0
      %v1097 = vmax.f32 %v1081, 0.0
      %v1098 = vmax.f32 %v1082, 0.0
      %v1099 = vmax.f32 %v1083, 0.0
      %v1100 = vmax.f32 %v1084, 0.0
      %v1101 = vmax.f32 %v1085, 0.0
      %v1102 = vmax.f32 %v1086, 0.0
      %v1103 = vmax.f32 %v1087, 0.0
      %v1104 = vld [vmem:[%s3 + $0xc0] sm:$0xff]
      %v1105 = vld [vmem:[%s3 + $0xc8] sm:$0xff]
      %v1106 = vld [vmem:[%s3 + $0xd0] sm:$0xff]
      %v1107 = vld [vmem:[%s3 + $0xd8] sm:$0xff]
      %v1108 = vld [vmem:[%s3 + $0xe0] sm:$0x1]
      %v1109 = vperm.slane %v1108, 0
      %v1111 = vsel %vm491, %v1088, 0
      %v1114 = vsel %vm491, %v1089, 0
      %v1117 = vsel %vm491, %v1090, 0
      %v1120 = vsel %vm491, %v1091, 0
      %v1123 = vsel %vm491, %v1092, 0
      %v1126 = vsel %vm491, %v1093, 0
      %v1129 = vsel %vm491, %v1094, 0
      %v1132 = vsel %vm491, %v1095, 0
      %v1135 = vsel %vm491, %v1096, 0
      %v1138 = vsel %vm491, %v1097, 0
      %v1141 = vsel %vm491, %v1098, 0
      %v1144 = vsel %vm491, %v1099, 0
      %v1147 = vsel %vm491, %v1100, 0
      %v1150 = vsel %vm491, %v1101, 0
      %v1153 = vsel %vm491, %v1102, 0
      %v1156 = vsel %vm491, %v1103, 0
      %1158 = vmatpush.msra.mxu0 0.0
      %1159 = vmatpush.msra.mxu0 0.0
      %1160 = vmatpush.msra.mxu0 0.0
      %1161 = vmatpush.msra.mxu0 0.0
      %1162 = vmatpush.msra.mxu0 0.0
      %1163 = vmatpush.msra.mxu0 0.0
      %1164 = vmatpush.msra.mxu0 0.0
      %1165 = vmatpush.msra.mxu0 0.0
      %1166 = vmatpush.msra.mxu0 0.0
      %1167 = vmatpush.msra.mxu0 0.0
      %1168 = vmatpush.msra.mxu0 0.0
      %1169 = vmatpush.msra.mxu0 0.0
      %1170 = vmatpush.msra.mxu0 %v1107
      %1171 = vmatpush.msra.mxu0 %v1106
      %1172 = vmatpush.msra.mxu0 %v1105
      %1173 = vmatpush.msra.mxu0 %v1104
      %1174 = vmatmul.f32.gmra.mxu0 %v1111
      %v1175 = vpop.f32.mrf.mxu0
      %v1176 = vadd.f32 %v1109, %v1175
      %1177 = vmatmul.f32.gmra.mxu0 %v1114
      %v1178 = vpop.f32.mrf.mxu0
      %v1179 = vadd.f32 %v1109, %v1178
      %1180 = vmatmul.f32.gmra.mxu0 %v1117
      %v1181 = vpop.f32.mrf.mxu0
      %v1182 = vadd.f32 %v1109, %v1181
      %1183 = vmatmul.f32.gmra.mxu0 %v1120
      %v1184 = vpop.f32.mrf.mxu0
      %v1185 = vadd.f32 %v1109, %v1184
      %1186 = vmatmul.f32.gmra.mxu0 %v1123
      %v1187 = vpop.f32.mrf.mxu0
      %v1188 = vadd.f32 %v1109, %v1187
      %1189 = vmatmul.f32.gmra.mxu0 %v1126
      %v1190 = vpop.f32.mrf.mxu0
      %v1191 = vadd.f32 %v1109, %v1190
      %1192 = vmatmul.f32.gmra.mxu0 %v1129
      %v1193 = vpop.f32.mrf.mxu0
      %v1194 = vadd.f32 %v1109, %v1193
      %1195 = vmatmul.f32.gmra.mxu0 %v1132
      %v1196 = vpop.f32.mrf.mxu0
      %v1197 = vadd.f32 %v1109, %v1196
      %1198 = vmatmul.f32.gmra.mxu0 %v1135
      %v1199 = vpop.f32.mrf.mxu0
      %v1200 = vadd.f32 %v1109, %v1199
      %1201 = vmatmul.f32.gmra.mxu0 %v1138
      %v1202 = vpop.f32.mrf.mxu0
      %v1203 = vadd.f32 %v1109, %v1202
      %1204 = vmatmul.f32.gmra.mxu0 %v1141
      %v1205 = vpop.f32.mrf.mxu0
      %v1206 = vadd.f32 %v1109, %v1205
      %1207 = vmatmul.f32.gmra.mxu0 %v1144
      %v1208 = vpop.f32.mrf.mxu0
      %v1209 = vadd.f32 %v1109, %v1208
      %1210 = vmatmul.f32.gmra.mxu0 %v1147
      %v1211 = vpop.f32.mrf.mxu0
      %v1212 = vadd.f32 %v1109, %v1211
      %1213 = vmatmul.f32.gmra.mxu0 %v1150
      %v1214 = vpop.f32.mrf.mxu0
      %v1215 = vadd.f32 %v1109, %v1214
      %1216 = vmatmul.f32.gmra.mxu0 %v1153
      %v1217 = vpop.f32.mrf.mxu0
      %v1218 = vadd.f32 %v1109, %v1217
      %1219 = vmatmul.f32.gmra.mxu0 %v1156
      %v1220 = vpop.f32.mrf.mxu0
      %v1221 = vadd.f32 %v1109, %v1220
      %1222 = vdwg.mxu0
      %v1223 = vmax.f32 %v1176, 0.0
      %v1224 = vmax.f32 %v1179, 0.0
      %v1225 = vmax.f32 %v1182, 0.0
      %v1226 = vmax.f32 %v1185, 0.0
      %v1227 = vmax.f32 %v1188, 0.0
      %v1228 = vmax.f32 %v1191, 0.0
      %v1229 = vmax.f32 %v1194, 0.0
      %v1230 = vmax.f32 %v1197, 0.0
      %v1231 = vmax.f32 %v1200, 0.0
      %v1232 = vmax.f32 %v1203, 0.0
      %v1233 = vmax.f32 %v1206, 0.0
      %v1234 = vmax.f32 %v1209, 0.0
      %v1235 = vmax.f32 %v1212, 0.0
      %v1236 = vmax.f32 %v1215, 0.0
      %v1237 = vmax.f32 %v1218, 0.0
      %v1238 = vmax.f32 %v1221, 0.0
      %v1239 = vld [vmem:[%s4] sm:$0xff]
      %v1240 = vld [vmem:[%s4 + $0x8] sm:$0xff]
      %v1241 = vld [vmem:[%s4 + $0x10] sm:$0xff]
      %v1242 = vld [vmem:[%s4 + $0x18] sm:$0xff]
      %v1243 = vld [vmem:[%s4 + $0x20] sm:$0x1]
      %v1244 = vperm.slane %v1243, 0
      %v1246 = vsel %vm491, %v1223, 0
      %v1249 = vsel %vm491, %v1224, 0
      %v1252 = vsel %vm491, %v1225, 0
      %v1255 = vsel %vm491, %v1226, 0
      %v1258 = vsel %vm491, %v1227, 0
      %v1261 = vsel %vm491, %v1228, 0
      %v1264 = vsel %vm491, %v1229, 0
      %v1267 = vsel %vm491, %v1230, 0
      %v1270 = vsel %vm491, %v1231, 0
      %v1273 = vsel %vm491, %v1232, 0
      %v1276 = vsel %vm491, %v1233, 0
      %v1279 = vsel %vm491, %v1234, 0
      %v1282 = vsel %vm491, %v1235, 0
      %v1285 = vsel %vm491, %v1236, 0
      %v1288 = vsel %vm491, %v1237, 0
      %v1291 = vsel %vm491, %v1238, 0
      %1293 = vmatpush.msra.mxu0 0.0
      %1294 = vmatpush.msra.mxu0 0.0
      %1295 = vmatpush.msra.mxu0 0.0
      %1296 = vmatpush.msra.mxu0 0.0
      %1297 = vmatpush.msra.mxu0 0.0
      %1298 = vmatpush.msra.mxu0 0.0
      %1299 = vmatpush.msra.mxu0 0.0
      %1300 = vmatpush.msra.mxu0 0.0
      %1301 = vmatpush.msra.mxu0 0.0
      %1302 = vmatpush.msra.mxu0 0.0
      %1303 = vmatpush.msra.mxu0 0.0
      %1304 = vmatpush.msra.mxu0 0.0
      %1305 = vmatpush.msra.mxu0 %v1242
      %1306 = vmatpush.msra.mxu0 %v1241
      %1307 = vmatpush.msra.mxu0 %v1240
      %1308 = vmatpush.msra.mxu0 %v1239
      %1309 = vmatmul.f32.gmra.mxu0 %v1246
      %v1310 = vpop.f32.mrf.mxu0
      %v1311 = vadd.f32 %v1244, %v1310
      %1312 = vmatmul.f32.gmra.mxu0 %v1249
      %v1313 = vpop.f32.mrf.mxu0
      %v1314 = vadd.f32 %v1244, %v1313
      %1315 = vmatmul.f32.gmra.mxu0 %v1252
      %v1316 = vpop.f32.mrf.mxu0
      %v1317 = vadd.f32 %v1244, %v1316
      %1318 = vmatmul.f32.gmra.mxu0 %v1255
      %v1319 = vpop.f32.mrf.mxu0
      %v1320 = vadd.f32 %v1244, %v1319
      %1321 = vmatmul.f32.gmra.mxu0 %v1258
      %v1322 = vpop.f32.mrf.mxu0
      %v1323 = vadd.f32 %v1244, %v1322
      %1324 = vmatmul.f32.gmra.mxu0 %v1261
      %v1325 = vpop.f32.mrf.mxu0
      %v1326 = vadd.f32 %v1244, %v1325
      %1327 = vmatmul.f32.gmra.mxu0 %v1264
      %v1328 = vpop.f32.mrf.mxu0
      %v1329 = vadd.f32 %v1244, %v1328
      %1330 = vmatmul.f32.gmra.mxu0 %v1267
      %v1331 = vpop.f32.mrf.mxu0
      %v1332 = vadd.f32 %v1244, %v1331
      %1333 = vmatmul.f32.gmra.mxu0 %v1270
      %v1334 = vpop.f32.mrf.mxu0
      %v1335 = vadd.f32 %v1244, %v1334
      %1336 = vmatmul.f32.gmra.mxu0 %v1273
      %v1337 = vpop.f32.mrf.mxu0
      %v1338 = vadd.f32 %v1244, %v1337
      %1339 = vmatmul.f32.gmra.mxu0 %v1276
      %v1340 = vpop.f32.mrf.mxu0
      %v1341 = vadd.f32 %v1244, %v1340
      %1342 = vmatmul.f32.gmra.mxu0 %v1279
      %v1343 = vpop.f32.mrf.mxu0
      %v1344 = vadd.f32 %v1244, %v1343
      %1345 = vmatmul.f32.gmra.mxu0 %v1282
      %v1346 = vpop.f32.mrf.mxu0
      %v1347 = vadd.f32 %v1244, %v1346
      %1348 = vmatmul.f32.gmra.mxu0 %v1285
      %v1349 = vpop.f32.mrf.mxu0
      %v1350 = vadd.f32 %v1244, %v1349
      %1351 = vmatmul.f32.gmra.mxu0 %v1288
      %v1352 = vpop.f32.mrf.mxu0
      %v1353 = vadd.f32 %v1244, %v1352
      %1354 = vmatmul.f32.gmra.mxu0 %v1291
      %v1355 = vpop.f32.mrf.mxu0
      %v1356 = vadd.f32 %v1244, %v1355
      %1357 = vdwg.mxu0
      %v1358 = vlaneseq
      %v1359 = vand.u32 %v1358, 127
      %vm1360 = vcmp.ge.s32.totalorder %v1359, 1
      %v1361 = vmax.f32 %v1311, 0.0
      %v1362 = vmax.f32 %v1314, 0.0
      %v1363 = vmax.f32 %v1317, 0.0
      %v1364 = vmax.f32 %v1320, 0.0
      %v1365 = vmax.f32 %v1323, 0.0
      %v1366 = vmax.f32 %v1326, 0.0
      %v1367 = vmax.f32 %v1329, 0.0
      %v1368 = vmax.f32 %v1332, 0.0
      %v1369 = vmax.f32 %v1335, 0.0
      %v1370 = vmax.f32 %v1338, 0.0
      %v1371 = vmax.f32 %v1341, 0.0
      %v1372 = vmax.f32 %v1344, 0.0
      %v1373 = vmax.f32 %v1347, 0.0
      %v1374 = vmax.f32 %v1350, 0.0
      %v1375 = vmax.f32 %v1353, 0.0
      %v1376 = vmax.f32 %v1356, 0.0
      %vm1377 = vcmp.ne.f32.partialorder %v1311, %v1311
      %vm1378 = vcmp.ne.f32.partialorder %v1314, %v1314
      %vm1379 = vcmp.ne.f32.partialorder %v1317, %v1317
      %vm1380 = vcmp.ne.f32.partialorder %v1320, %v1320
      %vm1381 = vcmp.ne.f32.partialorder %v1323, %v1323
      %vm1382 = vcmp.ne.f32.partialorder %v1326, %v1326
      %vm1383 = vcmp.ne.f32.partialorder %v1329, %v1329
      %vm1384 = vcmp.ne.f32.partialorder %v1332, %v1332
      %vm1385 = vcmp.ne.f32.partialorder %v1335, %v1335
      %vm1386 = vcmp.ne.f32.partialorder %v1338, %v1338
      %vm1387 = vcmp.ne.f32.partialorder %v1341, %v1341
      %vm1388 = vcmp.ne.f32.partialorder %v1344, %v1344
      %vm1389 = vcmp.ne.f32.partialorder %v1347, %v1347
      %vm1390 = vcmp.ne.f32.partialorder %v1350, %v1350
      %vm1391 = vcmp.ne.f32.partialorder %v1353, %v1353
      %vm1392 = vcmp.ne.f32.partialorder %v1356, %v1356
      %v1393 = vadd.f32 %v1311, 0.0
      %v1394 = vadd.f32 %v1314, 0.0
      %v1395 = vadd.f32 %v1317, 0.0
      %v1396 = vadd.f32 %v1320, 0.0
      %v1397 = vadd.f32 %v1323, 0.0
      %v1398 = vadd.f32 %v1326, 0.0
      %v1399 = vadd.f32 %v1329, 0.0
      %v1400 = vadd.f32 %v1332, 0.0
      %v1401 = vadd.f32 %v1335, 0.0
      %v1402 = vadd.f32 %v1338, 0.0
      %v1403 = vadd.f32 %v1341, 0.0
      %v1404 = vadd.f32 %v1344, 0.0
      %v1405 = vadd.f32 %v1347, 0.0
      %v1406 = vadd.f32 %v1350, 0.0
      %v1407 = vadd.f32 %v1353, 0.0
      %v1408 = vadd.f32 %v1356, 0.0
      %v1409 = vand.u32 2147483647, %v1311
      %v1410 = vand.u32 2147483647, %v1314
      %v1411 = vand.u32 2147483647, %v1317
      %v1412 = vand.u32 2147483647, %v1320
      %v1413 = vand.u32 2147483647, %v1323
      %v1414 = vand.u32 2147483647, %v1326
      %v1415 = vand.u32 2147483647, %v1329
      %v1416 = vand.u32 2147483647, %v1332
      %v1417 = vand.u32 2147483647, %v1335
      %v1418 = vand.u32 2147483647, %v1338
      %v1419 = vand.u32 2147483647, %v1341
      %v1420 = vand.u32 2147483647, %v1344
      %v1421 = vand.u32 2147483647, %v1347
      %v1422 = vand.u32 2147483647, %v1350
      %v1423 = vand.u32 2147483647, %v1353
      %v1424 = vand.u32 2147483647, %v1356
      %v1425 = vsub.f32 0.0, %v1409
      %v1426 = vsub.f32 0.0, %v1410
      %v1427 = vsub.f32 0.0, %v1411
      %v1428 = vsub.f32 0.0, %v1412
      %v1429 = vsub.f32 0.0, %v1413
      %v1430 = vsub.f32 0.0, %v1414
      %v1431 = vsub.f32 0.0, %v1415
      %v1432 = vsub.f32 0.0, %v1416
      %v1433 = vsub.f32 0.0, %v1417
      %v1434 = vsub.f32 0.0, %v1418
      %v1435 = vsub.f32 0.0, %v1419
      %v1436 = vsub.f32 0.0, %v1420
      %v1437 = vsub.f32 0.0, %v1421
      %v1438 = vsub.f32 0.0, %v1422
      %v1439 = vsub.f32 0.0, %v1423
      %v1440 = vsub.f32 0.0, %v1424
      %v1441 = vmul.f32 %v1425, 1.442695
      %v1442 = vpow.pop %v1441
      %v1443 = vmul.f32 %v1426, 1.442695
      %v1444 = vpow.pop %v1443
      %v1445 = vmul.f32 %v1427, 1.442695
      %v1446 = vpow.pop %v1445
      %v1447 = vmul.f32 %v1428, 1.442695
      %v1448 = vpow.pop %v1447
      %v1449 = vmul.f32 %v1429, 1.442695
      %v1450 = vpow.pop %v1449
      %v1451 = vmul.f32 %v1430, 1.442695
      %v1452 = vpow.pop %v1451
      %v1453 = vmul.f32 %v1431, 1.442695
      %v1454 = vpow.pop %v1453
      %v1455 = vmul.f32 %v1432, 1.442695
      %v1456 = vpow.pop %v1455
      %v1457 = vmul.f32 %v1433, 1.442695
      %v1458 = vpow.pop %v1457
      %v1459 = vmul.f32 %v1434, 1.442695
      %v1460 = vpow.pop %v1459
      %v1461 = vmul.f32 %v1435, 1.442695
      %v1462 = vpow.pop %v1461
      %v1463 = vmul.f32 %v1436, 1.442695
      %v1464 = vpow.pop %v1463
      %v1465 = vmul.f32 %v1437, 1.442695
      %v1466 = vpow.pop %v1465
      %v1467 = vmul.f32 %v1438, 1.442695
      %v1468 = vpow.pop %v1467
      %v1469 = vmul.f32 %v1439, 1.442695
      %v1470 = vpow.pop %v1469
      %v1471 = vmul.f32 %v1440, 1.442695
      %v1472 = vpow.pop %v1471
      %v1473 = vadd.f32 %v1442, 1.0
      %v1474 = vlog2.pop %v1473
      %v1475 = vmul.f32 %v1474, 0.6931472
      %v1476 = vmul.f32 -0.5, %v1442
      %v1477 = vadd.f32 %v1476, 1.0
      %v1478 = vmul.f32 %v1477, %v1442
      %v1479 = vand.u32 2147483647, %v1442
      %vm1480 = vcmp.lt.f32.partialorder %v1479, 0.0004427343
      %v1481 = vsel %vm1480, %v1478, %v1475
      %v1482 = vadd.f32 %v1444, 1.0
      %v1483 = vlog2.pop %v1482
      %v1484 = vmul.f32 %v1483, 0.6931472
      %v1485 = vmul.f32 -0.5, %v1444
      %v1486 = vadd.f32 %v1485, 1.0
      %v1487 = vmul.f32 %v1486, %v1444
      %v1488 = vand.u32 2147483647, %v1444
      %vm1489 = vcmp.lt.f32.partialorder %v1488, 0.0004427343
      %v1490 = vsel %vm1489, %v1487, %v1484
      %v1491 = vadd.f32 %v1446, 1.0
      %v1492 = vlog2.pop %v1491
      %v1493 = vmul.f32 %v1492, 0.6931472
      %v1494 = vmul.f32 -0.5, %v1446
      %v1495 = vadd.f32 %v1494, 1.0
      %v1496 = vmul.f32 %v1495, %v1446
      %v1497 = vand.u32 2147483647, %v1446
      %vm1498 = vcmp.lt.f32.partialorder %v1497, 0.0004427343
      %v1499 = vsel %vm1498, %v1496, %v1493
      %v1500 = vadd.f32 %v1448, 1.0
      %v1501 = vlog2.pop %v1500
      %v1502 = vmul.f32 %v1501, 0.6931472
      %v1503 = vmul.f32 -0.5, %v1448
      %v1504 = vadd.f32 %v1503, 1.0
      %v1505 = vmul.f32 %v1504, %v1448
      %v1506 = vand.u32 2147483647, %v1448
      %vm1507 = vcmp.lt.f32.partialorder %v1506, 0.0004427343
      %v1508 = vsel %vm1507, %v1505, %v1502
      %v1509 = vadd.f32 %v1450, 1.0
      %v1510 = vlog2.pop %v1509
      %v1511 = vmul.f32 %v1510, 0.6931472
      %v1512 = vmul.f32 -0.5, %v1450
      %v1513 = vadd.f32 %v1512, 1.0
      %v1514 = vmul.f32 %v1513, %v1450
      %v1515 = vand.u32 2147483647, %v1450
      %vm1516 = vcmp.lt.f32.partialorder %v1515, 0.0004427343
      %v1517 = vsel %vm1516, %v1514, %v1511
      %v1518 = vadd.f32 %v1452, 1.0
      %v1519 = vlog2.pop %v1518
      %v1520 = vmul.f32 %v1519, 0.6931472
      %v1521 = vmul.f32 -0.5, %v1452
      %v1522 = vadd.f32 %v1521, 1.0
      %v1523 = vmul.f32 %v1522, %v1452
      %v1524 = vand.u32 2147483647, %v1452
      %vm1525 = vcmp.lt.f32.partialorder %v1524, 0.0004427343
      %v1526 = vsel %vm1525, %v1523, %v1520
      %v1527 = vadd.f32 %v1454, 1.0
      %v1528 = vlog2.pop %v1527
      %v1529 = vmul.f32 %v1528, 0.6931472
      %v1530 = vmul.f32 -0.5, %v1454
      %v1531 = vadd.f32 %v1530, 1.0
      %v1532 = vmul.f32 %v1531, %v1454
      %v1533 = vand.u32 2147483647, %v1454
      %vm1534 = vcmp.lt.f32.partialorder %v1533, 0.0004427343
      %v1535 = vsel %vm1534, %v1532, %v1529
      %v1536 = vadd.f32 %v1456, 1.0
      %v1537 = vlog2.pop %v1536
      %v1538 = vmul.f32 %v1537, 0.6931472
      %v1539 = vmul.f32 -0.5, %v1456
      %v1540 = vadd.f32 %v1539, 1.0
      %v1541 = vmul.f32 %v1540, %v1456
      %v1542 = vand.u32 2147483647, %v1456
      %vm1543 = vcmp.lt.f32.partialorder %v1542, 0.0004427343
      %v1544 = vsel %vm1543, %v1541, %v1538
      %v1545 = vadd.f32 %v1458, 1.0
      %v1546 = vlog2.pop %v1545
      %v1547 = vmul.f32 %v1546, 0.6931472
      %v1548 = vmul.f32 -0.5, %v1458
      %v1549 = vadd.f32 %v1548, 1.0
      %v1550 = vmul.f32 %v1549, %v1458
      %v1551 = vand.u32 2147483647, %v1458
      %vm1552 = vcmp.lt.f32.partialorder %v1551, 0.0004427343
      %v1553 = vsel %vm1552, %v1550, %v1547
      %v1554 = vadd.f32 %v1460, 1.0
      %v1555 = vlog2.pop %v1554
      %v1556 = vmul.f32 %v1555, 0.6931472
      %v1557 = vmul.f32 -0.5, %v1460
      %v1558 = vadd.f32 %v1557, 1.0
      %v1559 = vmul.f32 %v1558, %v1460
      %v1560 = vand.u32 2147483647, %v1460
      %vm1561 = vcmp.lt.f32.partialorder %v1560, 0.0004427343
      %v1562 = vsel %vm1561, %v1559, %v1556
      %v1563 = vadd.f32 %v1462, 1.0
      %v1564 = vlog2.pop %v1563
      %v1565 = vmul.f32 %v1564, 0.6931472
      %v1566 = vmul.f32 -0.5, %v1462
      %v1567 = vadd.f32 %v1566, 1.0
      %v1568 = vmul.f32 %v1567, %v1462
      %v1569 = vand.u32 2147483647, %v1462
      %vm1570 = vcmp.lt.f32.partialorder %v1569, 0.0004427343
      %v1571 = vsel %vm1570, %v1568, %v1565
      %v1572 = vadd.f32 %v1464, 1.0
      %v1573 = vlog2.pop %v1572
      %v1574 = vmul.f32 %v1573, 0.6931472
      %v1575 = vmul.f32 -0.5, %v1464
      %v1576 = vadd.f32 %v1575, 1.0
      %v1577 = vmul.f32 %v1576, %v1464
      %v1578 = vand.u32 2147483647, %v1464
      %vm1579 = vcmp.lt.f32.partialorder %v1578, 0.0004427343
      %v1580 = vsel %vm1579, %v1577, %v1574
      %v1581 = vadd.f32 %v1466, 1.0
      %v1582 = vlog2.pop %v1581
      %v1583 = vmul.f32 %v1582, 0.6931472
      %v1584 = vmul.f32 -0.5, %v1466
      %v1585 = vadd.f32 %v1584, 1.0
      %v1586 = vmul.f32 %v1585, %v1466
      %v1587 = vand.u32 2147483647, %v1466
      %vm1588 = vcmp.lt.f32.partialorder %v1587, 0.0004427343
      %v1589 = vsel %vm1588, %v1586, %v1583
      %v1590 = vadd.f32 %v1468, 1.0
      %v1591 = vlog2.pop %v1590
      %v1592 = vmul.f32 %v1591, 0.6931472
      %v1593 = vmul.f32 -0.5, %v1468
      %v1594 = vadd.f32 %v1593, 1.0
      %v1595 = vmul.f32 %v1594, %v1468
      %v1596 = vand.u32 2147483647, %v1468
      %vm1597 = vcmp.lt.f32.partialorder %v1596, 0.0004427343
      %v1598 = vsel %vm1597, %v1595, %v1592
      %v1599 = vadd.f32 %v1470, 1.0
      %v1600 = vlog2.pop %v1599
      %v1601 = vmul.f32 %v1600, 0.6931472
      %v1602 = vmul.f32 -0.5, %v1470
      %v1603 = vadd.f32 %v1602, 1.0
      %v1604 = vmul.f32 %v1603, %v1470
      %v1605 = vand.u32 2147483647, %v1470
      %vm1606 = vcmp.lt.f32.partialorder %v1605, 0.0004427343
      %v1607 = vsel %vm1606, %v1604, %v1601
      %v1608 = vadd.f32 %v1472, 1.0
      %v1609 = vlog2.pop %v1608
      %v1610 = vmul.f32 %v1609, 0.6931472
      %v1611 = vmul.f32 -0.5, %v1472
      %v1612 = vadd.f32 %v1611, 1.0
      %v1613 = vmul.f32 %v1612, %v1472
      %v1614 = vand.u32 2147483647, %v1472
      %vm1615 = vcmp.lt.f32.partialorder %v1614, 0.0004427343
      %v1616 = vsel %vm1615, %v1613, %v1610
      %v1617 = vadd.f32 %v1361, %v1481
      %v1618 = vadd.f32 %v1362, %v1490
      %v1619 = vadd.f32 %v1363, %v1499
      %v1620 = vadd.f32 %v1364, %v1508
      %v1621 = vadd.f32 %v1365, %v1517
      %v1622 = vadd.f32 %v1366, %v1526
      %v1623 = vadd.f32 %v1367, %v1535
      %v1624 = vadd.f32 %v1368, %v1544
      %v1625 = vadd.f32 %v1369, %v1553
      %v1626 = vadd.f32 %v1370, %v1562
      %v1627 = vadd.f32 %v1371, %v1571
      %v1628 = vadd.f32 %v1372, %v1580
      %v1629 = vadd.f32 %v1373, %v1589
      %v1630 = vadd.f32 %v1374, %v1598
      %v1631 = vadd.f32 %v1375, %v1607
      %v1632 = vadd.f32 %v1376, %v1616
      %v1633 = vsel %vm1377, %v1393, %v1617
      %v1634 = vsel %vm1378, %v1394, %v1618
      %v1635 = vsel %vm1379, %v1395, %v1619
      %v1636 = vsel %vm1380, %v1396, %v1620
      %v1637 = vsel %vm1381, %v1397, %v1621
      %v1638 = vsel %vm1382, %v1398, %v1622
      %v1639 = vsel %vm1383, %v1399, %v1623
      %v1640 = vsel %vm1384, %v1400, %v1624
      %v1641 = vsel %vm1385, %v1401, %v1625
      %v1642 = vsel %vm1386, %v1402, %v1626
      %v1643 = vsel %vm1387, %v1403, %v1627
      %v1644 = vsel %vm1388, %v1404, %v1628
      %v1645 = vsel %vm1389, %v1405, %v1629
      %v1646 = vsel %vm1390, %v1406, %v1630
      %v1647 = vsel %vm1391, %v1407, %v1631
      %v1648 = vsel %vm1392, %v1408, %v1632
      %v1649 = vsel %vm1360, %v1633, %v1311
      %v1650 = vsel %vm1360, %v1634, %v1314
      %v1651 = vsel %vm1360, %v1635, %v1317
      %v1652 = vsel %vm1360, %v1636, %v1320
      %v1653 = vsel %vm1360, %v1637, %v1323
      %v1654 = vsel %vm1360, %v1638, %v1326
      %v1655 = vsel %vm1360, %v1639, %v1329
      %v1656 = vsel %vm1360, %v1640, %v1332
      %v1657 = vsel %vm1360, %v1641, %v1335
      %v1658 = vsel %vm1360, %v1642, %v1338
      %v1659 = vsel %vm1360, %v1643, %v1341
      %v1660 = vsel %vm1360, %v1644, %v1344
      %v1661 = vsel %vm1360, %v1645, %v1347
      %v1662 = vsel %vm1360, %v1646, %v1350
      %v1663 = vsel %vm1360, %v1647, %v1353
      %v1664 = vsel %vm1360, %v1648, %v1356
      %vm1665 = vcmask 15360
      %1666 = vst.msk [vmem:[%s275] sm:$0xff] %vm1665, %v1649
      %1667 = vst.msk [vmem:[%s275 + $0x8] sm:$0xff] %vm1665, %v1650
      %1668 = vst.msk [vmem:[%s275 + $0x10] sm:$0xff] %vm1665, %v1651
      %1669 = vst.msk [vmem:[%s275 + $0x18] sm:$0xff] %vm1665, %v1652
      %1670 = vst.msk [vmem:[%s275 + $0x20] sm:$0xff] %vm1665, %v1653
      %1671 = vst.msk [vmem:[%s275 + $0x28] sm:$0xff] %vm1665, %v1654
      %1672 = vst.msk [vmem:[%s275 + $0x30] sm:$0xff] %vm1665, %v1655
      %1673 = vst.msk [vmem:[%s275 + $0x38] sm:$0xff] %vm1665, %v1656
      %1674 = vst.msk [vmem:[%s275 + $0x40] sm:$0xff] %vm1665, %v1657
      %1675 = vst.msk [vmem:[%s275 + $0x48] sm:$0xff] %vm1665, %v1658
      %1676 = vst.msk [vmem:[%s275 + $0x50] sm:$0xff] %vm1665, %v1659
      %1677 = vst.msk [vmem:[%s275 + $0x58] sm:$0xff] %vm1665, %v1660
      %1678 = vst.msk [vmem:[%s275 + $0x60] sm:$0xff] %vm1665, %v1661
      %1679 = vst.msk [vmem:[%s275 + $0x68] sm:$0xff] %vm1665, %v1662
      %1680 = vst.msk [vmem:[%s275 + $0x70] sm:$0xff] %vm1665, %v1663
      %1681 = vst.msk [vmem:[%s275 + $0x78] sm:$0xff] %vm1665, %v1664
      %s1682 = smul.u32 8, %s16
      %p1683 = scmp.lt.s32.totalorder %s1682, 15
      %s1684 = scalar_select %p1683, %s1682, 15
      %s1685 = smul.addr %s1684, 2
      %s1686 = smul.addr %s1685, 8
      %s1687 = scalar_lea.vmem %s5, %s1686
      // Predicated region
      $region41: #{tpu_custom_call.1} parent=39 // pred_check
        %p1688 = pneg %p154
      $region42: #{tpu_custom_call.1} parent=39 // pred_check_branch
        %1690 = sbr.rel (%p1688) target = $region44
      $region43: #{tpu_custom_call.1} parent=39 // pred_region
        %s1691 = smul.u32 8, %s16
      $region44: #{tpu_custom_call.1} parent=39 // pred_fallthru
        _
    $region40: #{tpu_custom_call.1} parent=5 // pred_fallthru
      _
    %p1692 = scmp.le.s32.totalorder 2, %s11
    // Predicated region
    $region45: #{tpu_custom_call.1} parent=5 // pred_check
      %p1693 = pneg %p1692
    $region46: #{tpu_custom_call.1} parent=5 // pred_check_branch
      %1695 = sbr.rel (%p1693) target = $region48
    $region47: #{tpu_custom_call.1} parent=5 // pred_region
      %s1696 = ssub.s32 %s11, 2
      // Predicated region
      $region49: #{tpu_custom_call.1} parent=47 // pred_check
        %p1697 = pneg %p160
      $region50: #{tpu_custom_call.1} parent=47 // pred_check_branch
        %1699 = sbr.rel (%p1697) target = $region52
      $region51: #{tpu_custom_call.1} parent=47 // pred_region
        %s1700 = smul.u32 8, %s17
        %p1701 = scmp.lt.s32.totalorder %s1700, 15
        %s1702 = scalar_select %p1701, %s1700, 15
        %s1703 = smul.addr %s1702, 2
        %s1704 = smul.addr %s1703, 8
        %s1705 = scalar_lea.vmem %s5, %s1704
      $region52: #{tpu_custom_call.1} parent=47 // pred_fallthru
        _
    $region48: #{tpu_custom_call.1} parent=5 // pred_fallthru
      _
  $region6: #{tpu_custom_call.1} parent=0 // loop_footer
    %s15 = sadd.s32 1, %s11
  $region7: #{tpu_custom_call.1} parent=0 // loop_footer_branch
    %10 = sbr.rel target = $region3
  $region8: #{tpu_custom_call.1} parent=0 // loop_exit
    _

</llo_original>
